<compile_context>
chip_gen: v7x
topology: tpu7x:2x2x1
jax: 0.10.0
libtpu: 0.0.40
codegen_flags: <defaults>
</compile_context>

<pallas_src>
import functools

import jax
import jax.numpy as jnp
import numpy as np
from jax import lax
from jax.experimental import pallas as pl
from jax.experimental.pallas import tpu as pltpu


def _round_up(x, m):
    return ((x + m - 1) // m) * m


def _discriminator_kernel(z_ref, w1t_ref, b1_ref, w2t_ref, b2_ref, w3_ref,
                          b3_ref, out_ref, *, epi_dtype):
    # Batch lives on the LANE axis of every intermediate: h1/h2 are
    # [fc_dim, tile_b] and the output is a lane-dense (1, tile_b) row
    # (unmasked vector stores, dense writeback DMA, no in-kernel transpose
    # of the activations).

    # Layer 1: W1^T [fc, z_dim] contracted with z [tile_b, z_dim] -> [fc, tile_b].
    # z arrives un-transposed in f32; the bf16 cast happens here (no wrapper
    # pass over z) and Mosaic handles the small z-side transpose on the XLU.
    zb = z_ref[...].astype(jnp.bfloat16)
    h1 = lax.dot_general(w1t_ref[...], zb,
                         dimension_numbers=(((1,), (1,)), ((), ())),
                         preferred_element_type=jnp.float32)
    # Bias + ReLU epilogue in epi_dtype (bf16 on v6e/v7x, f32 on v5e & older).
    h1 = jnp.maximum(h1.astype(epi_dtype) + b1_ref[...], 0)

    # Layer 2: W2^T [fc, fc] @ h1 [fc, tile_b] -> [fc, tile_b]  (bf16 MXU, f32 acc).
    h2 = jnp.dot(w2t_ref[...], h1.astype(jnp.bfloat16),
                 preferred_element_type=jnp.float32)
    h2 = jnp.maximum(h2.astype(epi_dtype) + b2_ref[...], 0)

    # Layer 3 (fc -> 1): VPU multiply + sublane (XLU) reduction instead of an
    # MXU matmul with a width-1 output.  Accumulation kept in f32 so the
    # 128-term sum stays accurate even with the bf16 epilogue above.
    logits = jnp.sum(h2.astype(jnp.float32) * w3_ref[...],
                     axis=0, keepdims=True) + b3_ref[...]

    # Numerically-stable sigmoid: exp(-|x|) never overflows; 1 + e is in [1, 2]
    # so the approximate EUP reciprocal is well behaved (no inf inputs).
    e = jnp.exp(-jnp.abs(logits))
    r = pl.reciprocal(1.0 + e, approx=True)
    out_ref[...] = jnp.where(logits >= 0.0, r, e * r).astype(out_ref.dtype)


def default_epilogue_dtype():
    """bf16 bias/ReLU epilogue on chips with a bf16 VALU (v6e / v7x)."""
    kind = jax.devices()[0].device_kind.lower()
    if any(tag in kind for tag in ("v2", "v3", "v4", "v5")):
        return jnp.float32          # no bf16 VALU on v5e and older
    return jnp.bfloat16             # v6e / v7x


def prepare_params(params, epilogue_dtype=jnp.float32):
    """One-time layout/dtype plumbing for the kernel (weights are tiny)."""
    w1, b1, w2, b2, w3, b3 = params              # w*: [in, out], b*: [1, out]
    fc_dim = w1.shape[1]
    return (w1.T.astype(jnp.bfloat16),                     # W1^T [fc, z_dim]
            b1.reshape(fc_dim, 1).astype(epilogue_dtype),  # b1   [fc, 1]
            w2.T.astype(jnp.bfloat16),                     # W2^T [fc, fc]
            b2.reshape(fc_dim, 1).astype(epilogue_dtype),  # b2   [fc, 1]
            w3.reshape(fc_dim, 1).astype(jnp.float32),     # w3   [fc, 1]
            b3.reshape(1, 1).astype(jnp.float32))          # b3   [1, 1]


def _choose_tile_b(B, tile_b):
    if tile_b is None:
        if B <= 4096:
            # Single grid step: whole batch in one lane tile (~5 MB VMEM max).
            tile_b = _round_up(max(B, 128), 128)
        else:
            # Stream large batches in wide lane tiles (per-step overhead
            # ~0.35 us; HBM DMA reaches its roofline at >=512-wide tiles).
            tile_b = 4096
            num_tiles = -(-B // tile_b)
            if num_tiles > 1 and num_tiles % 2 == 1:
                # Prefer an even number of grid steps so v7x's two TensorCores
                # (dimension_semantics="parallel") stay balanced.
                tile_b = max(512, _round_up(-(-B // (num_tiles + 1)), 128))
    return max(128, _round_up(tile_b, 128))


def discriminator_forward(z, prepared_params, tile_b=None):
    """z: [B, z_dim] f32 -> [B, 1] f32 sigmoid probabilities."""
    w1t, b1c, w2t, b2c, w3c, b3c = prepared_params
    epi_dtype = b1c.dtype
    B, z_dim = z.shape
    fc_dim = w1t.shape[0]

    tile_b = _choose_tile_b(B, tile_b)
    num_tiles = -(-B // tile_b)      # Pallas masks the partial last tile

    kernel = functools.partial(_discriminator_kernel, epi_dtype=epi_dtype)

    out = pl.pallas_call(
        kernel,
        out_shape=jax.ShapeDtypeStruct((1, B), jnp.float32),
        grid_spec=pltpu.PrefetchScalarGridSpec(
            num_scalar_prefetch=0,
            grid=(num_tiles,),
            in_specs=[
                pl.BlockSpec((tile_b, z_dim), lambda i: (i, 0)),   # z tile (streams)
                pl.BlockSpec((fc_dim, z_dim), lambda i: (0, 0)),   # W1^T (resident)
                pl.BlockSpec((fc_dim, 1), lambda i: (0, 0)),       # b1
                pl.BlockSpec((fc_dim, fc_dim), lambda i: (0, 0)),  # W2^T (resident)
                pl.BlockSpec((fc_dim, 1), lambda i: (0, 0)),       # b2
                pl.BlockSpec((fc_dim, 1), lambda i: (0, 0)),       # w3
                pl.BlockSpec((1, 1), lambda i: (0, 0)),            # b3
            ],
            out_specs=pl.BlockSpec((1, tile_b), lambda i: (0, i)),
        ),
        compiler_params=pltpu.CompilerParams(
            dimension_semantics=("parallel",)),   # v7x: shard batch over 2 TCs
    )(z, w1t, b1c, w2t, b2c, w3c, b3c)

    # Lane-dense (1, B) row -> [B, 1] to match the PyTorch module's output.
    return out.reshape(B, 1)


def xavier_uniform(key, fan_in, fan_out, dtype=jnp.float32):
    # Matches torch.nn.init.xavier_uniform_ with gain=1 (stored as [in, out]).
    limit = float(np.sqrt(6.0 / (fan_in + fan_out)))
    return jax.random.uniform(key, (fan_in, fan_out), dtype=dtype,
                              minval=-limit, maxval=limit)


def init_discriminator_params(key, z_dim, fc_dim=128):
    k1, k2, k3 = jax.random.split(key, 3)
    w1 = xavier_uniform(k1, z_dim, fc_dim)
    b1 = jnp.full((1, fc_dim), 0.01, dtype=jnp.float32)
    w2 = xavier_uniform(k2, fc_dim, fc_dim)
    b2 = jnp.full((1, fc_dim), 0.01, dtype=jnp.float32)
    w3 = xavier_uniform(k3, fc_dim, 1)
    b3 = jnp.full((1, 1), 0.01, dtype=jnp.float32)
    return (w1, b1, w2, b2, w3, b3)


def reference_forward(z, params):
    # Pure-JAX f32 reference (matches the PyTorch module exactly).
    w1, b1, w2, b2, w3, b3 = params
    h1 = jnp.maximum(z @ w1 + b1, 0.0)
    h2 = jnp.maximum(h1 @ w2 + b2, 0.0)
    return jax.nn.sigmoid(h2 @ w3 + b3)


if __name__ == "__main__":
    key = jax.random.PRNGKey(0)
    k_params, k_z = jax.random.split(key)

    B, Z_DIM, FC_DIM = 300, 32, 128          # B not a tile multiple -> exercises masking
    params = init_discriminator_params(k_params, Z_DIM, FC_DIM)
    z = jax.random.normal(k_z, (B, Z_DIM), dtype=jnp.float32)

    prepared = prepare_params(params, default_epilogue_dtype())
    out = discriminator_forward(z, prepared)   # single grid step at this size
    out = jax.block_until_ready(out)

    ref = reference_forward(z, params)
    assert out.shape == (B, 1), out.shape
    # bf16 MXU inputs (+ bf16 epilogue on v6e/v7x) + approx reciprocal ->
    # loosened tolerance vs the f32 reference.
    np.testing.assert_allclose(np.asarray(out), np.asarray(ref),
                               rtol=2e-2, atol=2e-2)
    print("KERNEL_OK")
</pallas_src>

<mosaic_0001>
module attributes {stable_mosaic.version = 11 : i64} {
  func.func @_discriminator_kernel(%arg0: i32, %arg1: memref<384x32xf32, #tpu.memory_space<vmem>>, %arg2: memref<128x32xbf16, #tpu.memory_space<vmem>>, %arg3: memref<128x1xbf16, #tpu.memory_space<vmem>>, %arg4: memref<128x128xbf16, #tpu.memory_space<vmem>>, %arg5: memref<128x1xbf16, #tpu.memory_space<vmem>>, %arg6: memref<128x1xf32, #tpu.memory_space<vmem>>, %arg7: memref<1x1xf32, #tpu.memory_space<vmem>>, %arg8: memref<1x384xf32, #tpu.memory_space<vmem>>) attributes {dimension_semantics = [#tpu.dimension_semantics<parallel>], iteration_bounds = array<i64: 1>, scalar_prefetch = 0 : i64, scratch_operands = 0 : i64, tpu.core_type = #tpu.core_type<tc>, window_params = [{transform_indices = @transform_0, window_bounds = array<i64: 384, 32>}, {pipeline_mode = #tpu.pipeline_mode<synchronous>, transform_indices = @transform_1, window_bounds = array<i64: 128, 32>}, {pipeline_mode = #tpu.pipeline_mode<synchronous>, transform_indices = @transform_2, window_bounds = array<i64: 128, 1>}, {pipeline_mode = #tpu.pipeline_mode<synchronous>, transform_indices = @transform_3, window_bounds = array<i64: 128, 128>}, {pipeline_mode = #tpu.pipeline_mode<synchronous>, transform_indices = @transform_4, window_bounds = array<i64: 128, 1>}, {pipeline_mode = #tpu.pipeline_mode<synchronous>, transform_indices = @transform_5, window_bounds = array<i64: 128, 1>}, {pipeline_mode = #tpu.pipeline_mode<synchronous>, transform_indices = @transform_6, window_bounds = array<i64: 1, 1>}, {transform_indices = @transform_7, window_bounds = array<i64: 1, 384>}]} {
    %c0 = arith.constant 0 : index
    %c0_0 = arith.constant 0 : index
    %0 = vector.load %arg1[%c0, %c0_0] : memref<384x32xf32, #tpu.memory_space<vmem>>, vector<384x32xf32>
    %1 = arith.truncf %0 : vector<384x32xf32> to vector<384x32xbf16>
    %c0_1 = arith.constant 0 : index
    %c0_2 = arith.constant 0 : index
    %2 = vector.load %arg2[%c0_1, %c0_2] : memref<128x32xbf16, #tpu.memory_space<vmem>>, vector<128x32xbf16>
    %cst = arith.constant dense<0.000000e+00> : vector<128x384xf32>
    %3 = tpu.matmul %2, %1, %cst {dimension_numbers = #tpu.dot_dimension_numbers<[1], [1], [0], [0], [0, 0, 1, 0], [], []>} : vector<128x32xbf16>, vector<384x32xbf16>, vector<128x384xf32> -> vector<128x384xf32>
    %4 = arith.truncf %3 : vector<128x384xf32> to vector<128x384xbf16>
    %c0_3 = arith.constant 0 : index
    %c0_4 = arith.constant 0 : index
    %5 = vector.load %arg3[%c0_3, %c0_4] : memref<128x1xbf16, #tpu.memory_space<vmem>>, vector<128x1xbf16>
    %6 = vector.broadcast %5 : vector<128x1xbf16> to vector<128x384xbf16>
    %7 = arith.addf %4, %6 : vector<128x384xbf16>
    %cst_5 = arith.constant 0.000000e+00 : bf16
    %8 = vector.broadcast %cst_5 : bf16 to vector<128x384xbf16>
    %9 = arith.maximumf %7, %8 : vector<128x384xbf16>
    %c0_6 = arith.constant 0 : index
    %c0_7 = arith.constant 0 : index
    %10 = vector.load %arg4[%c0_6, %c0_7] : memref<128x128xbf16, #tpu.memory_space<vmem>>, vector<128x128xbf16>
    %cst_8 = arith.constant dense<0.000000e+00> : vector<128x384xf32>
    %11 = tpu.matmul %10, %9, %cst_8 {dimension_numbers = #tpu.dot_dimension_numbers<[1], [0], [0], [1], [0, 0, 1, 1], [], []>} : vector<128x128xbf16>, vector<128x384xbf16>, vector<128x384xf32> -> vector<128x384xf32>
    %12 = arith.truncf %11 : vector<128x384xf32> to vector<128x384xbf16>
    %c0_9 = arith.constant 0 : index
    %c0_10 = arith.constant 0 : index
    %13 = vector.load %arg5[%c0_9, %c0_10] : memref<128x1xbf16, #tpu.memory_space<vmem>>, vector<128x1xbf16>
    %14 = vector.broadcast %13 : vector<128x1xbf16> to vector<128x384xbf16>
    %15 = arith.addf %12, %14 : vector<128x384xbf16>
    %cst_11 = arith.constant 0.000000e+00 : bf16
    %16 = vector.broadcast %cst_11 : bf16 to vector<128x384xbf16>
    %17 = arith.maximumf %15, %16 : vector<128x384xbf16>
    %18 = arith.extf %17 : vector<128x384xbf16> to vector<128x384xf32>
    %c0_12 = arith.constant 0 : index
    %c0_13 = arith.constant 0 : index
    %19 = vector.load %arg6[%c0_12, %c0_13] : memref<128x1xf32, #tpu.memory_space<vmem>>, vector<128x1xf32>
    %20 = vector.broadcast %19 : vector<128x1xf32> to vector<128x384xf32>
    %21 = arith.mulf %18, %20 : vector<128x384xf32>
    %cst_14 = arith.constant dense<0.000000e+00> : vector<384xf32>
    %22 = vector.multi_reduction <add>, %21, %cst_14 [0] : vector<128x384xf32> to vector<384xf32>
    %23 = vector.shape_cast %22 : vector<384xf32> to vector<1x384xf32>
    %c0_15 = arith.constant 0 : index
    %c0_16 = arith.constant 0 : index
    %24 = vector.load %arg7[%c0_15, %c0_16] : memref<1x1xf32, #tpu.memory_space<vmem>>, vector<1x1xf32>
    %25 = vector.broadcast %24 : vector<1x1xf32> to vector<1x384xf32>
    %26 = arith.addf %23, %25 : vector<1x384xf32>
    %27 = math.absf %26 : vector<1x384xf32>
    %cst_17 = arith.constant 0.000000e+00 : f32
    %28 = vector.broadcast %cst_17 : f32 to vector<1x384xf32>
    %29 = arith.subf %28, %27 : vector<1x384xf32>
    %30 = math.exp %29 : vector<1x384xf32>
    %cst_18 = arith.constant 1.000000e+00 : f32
    %31 = vector.broadcast %cst_18 : f32 to vector<1x384xf32>
    %32 = arith.addf %31, %30 : vector<1x384xf32>
    %33 = tpu.reciprocal %32 {approx = true} : vector<1x384xf32> -> vector<1x384xf32>
    %cst_19 = arith.constant 0.000000e+00 : f32
    %34 = vector.broadcast %cst_19 : f32 to vector<1x384xf32>
    %35 = arith.cmpf oge, %26, %34 : vector<1x384xf32>
    %36 = arith.mulf %30, %33 : vector<1x384xf32>
    %37 = arith.select %35, %33, %36 : vector<1x384xi1>, vector<1x384xf32>
    %c0_20 = arith.constant 0 : index
    %c0_21 = arith.constant 0 : index
    %38 = vector.load %arg8[%c0_20, %c0_21] : memref<1x384xf32, #tpu.memory_space<vmem>>, vector<1x384xf32>
    tpu.vector_store %arg8[%c0_20, %c0_21], %37 {strides = array<i32>} : memref<1x384xf32, #tpu.memory_space<vmem>>, vector<1x384xf32>,
    return
  }
  func.func @transform_0(%arg0: i32) -> (i32, i32) {
    %c0_i32 = arith.constant 0 : i32
    %c0_i32_0 = arith.constant 0 : i32
    return %arg0, %c0_i32 : i32, i32
  }
  func.func @transform_1(%arg0: i32) -> (i32, i32) {
    %c0_i32 = arith.constant 0 : i32
    %c0_i32_0 = arith.constant 0 : i32
    %c0_i32_1 = arith.constant 0 : i32
    return %c0_i32, %c0_i32_0 : i32, i32
  }
  func.func @transform_2(%arg0: i32) -> (i32, i32) {
    %c0_i32 = arith.constant 0 : i32
    %c0_i32_0 = arith.constant 0 : i32
    %c0_i32_1 = arith.constant 0 : i32
    return %c0_i32, %c0_i32_0 : i32, i32
  }
  func.func @transform_3(%arg0: i32) -> (i32, i32) {
    %c0_i32 = arith.constant 0 : i32
    %c0_i32_0 = arith.constant 0 : i32
    %c0_i32_1 = arith.constant 0 : i32
    return %c0_i32, %c0_i32_0 : i32, i32
  }
  func.func @transform_4(%arg0: i32) -> (i32, i32) {
    %c0_i32 = arith.constant 0 : i32
    %c0_i32_0 = arith.constant 0 : i32
    %c0_i32_1 = arith.constant 0 : i32
    return %c0_i32, %c0_i32_0 : i32, i32
  }
  func.func @transform_5(%arg0: i32) -> (i32, i32) {
    %c0_i32 = arith.constant 0 : i32
    %c0_i32_0 = arith.constant 0 : i32
    %c0_i32_1 = arith.constant 0 : i32
    return %c0_i32, %c0_i32_0 : i32, i32
  }
  func.func @transform_6(%arg0: i32) -> (i32, i32) {
    %c0_i32 = arith.constant 0 : i32
    %c0_i32_0 = arith.constant 0 : i32
    %c0_i32_1 = arith.constant 0 : i32
    return %c0_i32, %c0_i32_0 : i32, i32
  }
  func.func @transform_7(%arg0: i32) -> (i32, i32) {
    %c0_i32 = arith.constant 0 : i32
    %c0_i32_0 = arith.constant 0 : i32
    return %c0_i32, %arg0 : i32, i32
  }
}

</mosaic_0001>

<llo_original>
// kernel: tpu_custom_call.1
$region0: #{tpu_custom_call.1}
  #allocation0 [shape = 'u32[]', space=smem, size = 0x4, offset = 0x4, fixed_abs, tag = 'smem constant byte address 0x4 - core index']
  #allocation1 [shape = 'u32[144,128]{1,0:T(1,128)}', space=vmem, size = 0x12000, scoped, tag = 'internal scratch']
  #allocation2 [shape = 'f32[1,1]{1,0:T(1,128)S(1)}', space=vmem, size = 0x200, scoped, tag = 'scoped memory for tpu_custom_call.1']
  %s0 = inlined_call_operand.vmem [shape: f32[300,32], index: 0, kind: input, shape index: {}]
  %s1 = inlined_call_operand.vmem [shape: bf16[128,32], index: 1, kind: input, shape index: {}]
  %s2 = inlined_call_operand.vmem [shape: bf16[128,1], index: 2, kind: input, shape index: {}]
  %s3 = inlined_call_operand.vmem [shape: bf16[128,128], index: 3, kind: input, shape index: {}]
  %s4 = inlined_call_operand.vmem [shape: bf16[128,1], index: 4, kind: input, shape index: {}]
  %s5 = inlined_call_operand.vmem [shape: f32[128,1], index: 5, kind: input, shape index: {}]
  %s6 = inlined_call_operand.<no memory space> [shape: f32[1,1], index: 6, kind: input, shape index: {}]
  %s7 = inlined_call_operand.hbm [shape: f32[1,300], index: 7, kind: output, shape index: {}]
  %s8 = sld [smem:[#allocation0]]
  $region38: #{tpu_custom_call.1} parent=0
    _
  %s10 = ssub.s32 1, %s8
  %s11 = scalar_select 0, %s10, %s8
  %v12 = vstv %s6
  %13 = vst [vmem:[#allocation2] sm:$0x1] %v12
  $region1: #{tpu_custom_call.1} parent=0
    #allocation3 [shape = 'u8[1536]{0}', space=vmem, size = 0x800, scoped, tag = 'output window, operand 0, single buffered']
    #allocation4 [shape = 's32[1]{0}', space=sflag, size = 0x4, scoped, tag = 'scoped memory for tpu_custom_call.1']
    %14 = vsyncpa [#allocation4], 0
    // Predicated region
    $region2: #{tpu_custom_call.1} parent=1 // pred_check
      _
    $region3: #{tpu_custom_call.1} parent=1 // pred_check_branch
      %16 = sbr.rel (0) target = $region5
    $region4: #{tpu_custom_call.1} parent=1 // pred_region
      _
    $region5: #{tpu_custom_call.1} parent=1 // pred_fallthru
      _
    // Predicated region
    $region6: #{tpu_custom_call.1} parent=1 // pred_check
      _
    $region7: #{tpu_custom_call.1} parent=1 // pred_check_branch
      %18 = sbr.rel (0) target = $region9
    $region8: #{tpu_custom_call.1} parent=1 // pred_region
      _
    $region9: #{tpu_custom_call.1} parent=1 // pred_fallthru
      _
    // Predicated region
    $region10: #{tpu_custom_call.1} parent=1 // pred_check
      _
    $region11: #{tpu_custom_call.1} parent=1 // pred_check_branch
      %20 = sbr.rel (0) target = $region13
    $region12: #{tpu_custom_call.1} parent=1 // pred_region
      _
    $region13: #{tpu_custom_call.1} parent=1 // pred_fallthru
      _
    // Predicated region
    $region14: #{tpu_custom_call.1} parent=1 // pred_check
      _
    $region15: #{tpu_custom_call.1} parent=1 // pred_check_branch
      %22 = sbr.rel (0) target = $region17
    $region16: #{tpu_custom_call.1} parent=1 // pred_region
      _
    $region17: #{tpu_custom_call.1} parent=1 // pred_fallthru
      _
    // Predicated region
    $region18: #{tpu_custom_call.1} parent=1 // pred_check
      _
    $region19: #{tpu_custom_call.1} parent=1 // pred_check_branch
      %24 = sbr.rel (0) target = $region21
    $region20: #{tpu_custom_call.1} parent=1 // pred_region
      _
    $region21: #{tpu_custom_call.1} parent=1 // pred_fallthru
      _
    // Predicated region
    $region22: #{tpu_custom_call.1} parent=1 // pred_check
      _
    $region23: #{tpu_custom_call.1} parent=1 // pred_check_branch
      %26 = sbr.rel (0) target = $region25
    $region24: #{tpu_custom_call.1} parent=1 // pred_region
      _
    $region25: #{tpu_custom_call.1} parent=1 // pred_fallthru
      _
    // Predicated region
    $region26: #{tpu_custom_call.1} parent=1 // pred_check
      _
    $region27: #{tpu_custom_call.1} parent=1 // pred_check_branch
      %28 = sbr.rel (0) target = $region29
    $region28: #{tpu_custom_call.1} parent=1 // pred_region
      _
    $region29: #{tpu_custom_call.1} parent=1 // pred_fallthru
      _
    %v30 = vld [vmem:[%s0] sm:$0xff]
    %v31 = vld [vmem:[%s0 + $0x8] sm:$0xff]
    %v32 = vld [vmem:[%s0 + $0x10] sm:$0xff]
    %v33 = vld [vmem:[%s0 + $0x18] sm:$0xff]
    %v34 = vld [vmem:[%s0 + $0x20] sm:$0xff]
    %v35 = vld [vmem:[%s0 + $0x28] sm:$0xff]
    %v36 = vld [vmem:[%s0 + $0x30] sm:$0xff]
    %v37 = vld [vmem:[%s0 + $0x38] sm:$0xff]
    %v38 = vld [vmem:[%s0 + $0x40] sm:$0xff]
    %v39 = vld [vmem:[%s0 + $0x48] sm:$0xff]
    %v40 = vld [vmem:[%s0 + $0x50] sm:$0xff]
    %v41 = vld [vmem:[%s0 + $0x58] sm:$0xff]
    %v42 = vld [vmem:[%s0 + $0x60] sm:$0xff]
    %v43 = vld [vmem:[%s0 + $0x68] sm:$0xff]
    %v44 = vld [vmem:[%s0 + $0x70] sm:$0xff]
    %v45 = vld [vmem:[%s0 + $0x78] sm:$0xff]
    %v46 = vld [vmem:[%s0 + $0x80] sm:$0xff]
    %v47 = vld [vmem:[%s0 + $0x88] sm:$0xff]
    %v48 = vld [vmem:[%s0 + $0x90] sm:$0xff]
    %v49 = vld [vmem:[%s0 + $0x98] sm:$0xff]
    %v50 = vld [vmem:[%s0 + $0xa0] sm:$0xff]
    %v51 = vld [vmem:[%s0 + $0xa8] sm:$0xff]
    %v52 = vld [vmem:[%s0 + $0xb0] sm:$0xff]
    %v53 = vld [vmem:[%s0 + $0xb8] sm:$0xff]
    %v54 = vld [vmem:[%s0 + $0xc0] sm:$0xff]
    %v55 = vld [vmem:[%s0 + $0xc8] sm:$0xff]
    %v56 = vld [vmem:[%s0 + $0xd0] sm:$0xff]
    %v57 = vld [vmem:[%s0 + $0xd8] sm:$0xff]
    %v58 = vld [vmem:[%s0 + $0xe0] sm:$0xff]
    %v59 = vld [vmem:[%s0 + $0xe8] sm:$0xff]
    %v60 = vld [vmem:[%s0 + $0xf0] sm:$0xff]
    %v61 = vld [vmem:[%s0 + $0xf8] sm:$0xff]
    %v62 = vld [vmem:[%s0 + $0x100] sm:$0xff]
    %v63 = vld [vmem:[%s0 + $0x108] sm:$0xff]
    %v64 = vld [vmem:[%s0 + $0x110] sm:$0xff]
    %v65 = vld [vmem:[%s0 + $0x118] sm:$0xff]
    %v66 = vld [vmem:[%s0 + $0x120] sm:$0xff]
    %v67 = vld [vmem:[%s0 + $0x128] sm:$0xff]
    %v68 = vld [vmem:[%s0 + $0x130] sm:$0xff]
    %v69 = vld [vmem:[%s0 + $0x138] sm:$0xff]
    %v70 = vld [vmem:[%s0 + $0x140] sm:$0xff]
    %v71 = vld [vmem:[%s0 + $0x148] sm:$0xff]
    %v72 = vld [vmem:[%s0 + $0x150] sm:$0xff]
    %v73 = vld [vmem:[%s0 + $0x158] sm:$0xff]
    %v74 = vld [vmem:[%s0 + $0x160] sm:$0xff]
    %v75 = vld [vmem:[%s0 + $0x168] sm:$0xff]
    %v76 = vld [vmem:[%s0 + $0x170] sm:$0xff]
    %v77 = vld [vmem:[%s0 + $0x178] sm:$0xff]
    %v78 = vpack.c.bf16 %v31, %v30
    %v79 = vpack.c.bf16 %v33, %v32
    %v80 = vpack.c.bf16 %v35, %v34
    %v81 = vpack.c.bf16 %v37, %v36
    %v82 = vpack.c.bf16 %v39, %v38
    %v83 = vpack.c.bf16 %v41, %v40
    %v84 = vpack.c.bf16 %v43, %v42
    %v85 = vpack.c.bf16 %v45, %v44
    %v86 = vpack.c.bf16 %v47, %v46
    %v87 = vpack.c.bf16 %v49, %v48
    %v88 = vpack.c.bf16 %v51, %v50
    %v89 = vpack.c.bf16 %v53, %v52
    %v90 = vpack.c.bf16 %v55, %v54
    %v91 = vpack.c.bf16 %v57, %v56
    %v92 = vpack.c.bf16 %v59, %v58
    %v93 = vpack.c.bf16 %v61, %v60
    %v94 = vpack.c.bf16 %v63, %v62
    %v95 = vpack.c.bf16 %v65, %v64
    %v96 = vpack.c.bf16 %v67, %v66
    %v97 = vpack.c.bf16 %v69, %v68
    %v98 = vpack.c.bf16 %v71, %v70
    %v99 = vpack.c.bf16 %v73, %v72
    %v100 = vpack.c.bf16 %v75, %v74
    %v101 = vpack.c.bf16 %v77, %v76
    %v102 = vld [vmem:[%s1] sm:$0xf]
    %v103 = vld [vmem:[%s1 + $0x4] sm:$0xf]
    %v104 = vld [vmem:[%s1 + $0x8] sm:$0xf]
    %v105 = vld [vmem:[%s1 + $0xc] sm:$0xf]
    %v106 = vld [vmem:[%s1 + $0x10] sm:$0xf]
    %v107 = vld [vmem:[%s1 + $0x14] sm:$0xf]
    %v108 = vld [vmem:[%s1 + $0x18] sm:$0xf]
    %v109 = vld [vmem:[%s1 + $0x1c] sm:$0xf]
    %v110 = vld [vmem:[%s1 + $0x20] sm:$0xf]
    %v111 = vld [vmem:[%s1 + $0x24] sm:$0xf]
    %v112 = vld [vmem:[%s1 + $0x28] sm:$0xf]
    %v113 = vld [vmem:[%s1 + $0x2c] sm:$0xf]
    %v114 = vld [vmem:[%s1 + $0x30] sm:$0xf]
    %v115 = vld [vmem:[%s1 + $0x34] sm:$0xf]
    %v116 = vld [vmem:[%s1 + $0x38] sm:$0xf]
    %v117 = vld [vmem:[%s1 + $0x3c] sm:$0xf]
    %v134 = vunpack.c.l.b16 %v102
    %v135 = vunpack.c.l.b16 %v103
    %v136 = vunpack.c.l.b16 %v104
    %v137 = vunpack.c.l.b16 %v105
    %v138 = vunpack.c.l.b16 %v106
    %v139 = vunpack.c.l.b16 %v107
    %v140 = vunpack.c.l.b16 %v108
    %v141 = vunpack.c.l.b16 %v109
    %v142 = vunpack.c.l.b16 %v110
    %v143 = vunpack.c.l.b16 %v111
    %v144 = vunpack.c.l.b16 %v112
    %v145 = vunpack.c.l.b16 %v113
    %v146 = vunpack.c.l.b16 %v114
    %v147 = vunpack.c.l.b16 %v115
    %v148 = vunpack.c.l.b16 %v116
    %v149 = vunpack.c.l.b16 %v117
    %v150 = vpack.c.b16 %v135, %v134
    %v151 = vpack.c.b16 %v137, %v136
    %v152 = vpack.c.b16 %v139, %v138
    %v153 = vpack.c.b16 %v141, %v140
    %v154 = vpack.c.b16 %v143, %v142
    %v155 = vpack.c.b16 %v145, %v144
    %v156 = vpack.c.b16 %v147, %v146
    %v157 = vpack.c.b16 %v149, %v148
    %vm158 = vcmask 261120
    %v160 = vsel %vm158, %v150, 0
    %v163 = vsel %vm158, %v151, 0
    %v166 = vsel %vm158, %v152, 0
    %v169 = vsel %vm158, %v153, 0
    %v172 = vsel %vm158, %v154, 0
    %v175 = vsel %vm158, %v155, 0
    %v178 = vsel %vm158, %v156, 0
    %v181 = vsel %vm158, %v157, 0
    %v184 = vsel %vm158, %v78, 0
    %v187 = vsel %vm158, %v79, 0
    %v190 = vsel %vm158, %v80, 0
    %v193 = vsel %vm158, %v81, 0
    %v196 = vsel %vm158, %v82, 0
    %v199 = vsel %vm158, %v83, 0
    %v202 = vsel %vm158, %v84, 0
    %v205 = vsel %vm158, %v85, 0
    %v208 = vsel %vm158, %v86, 0
    %v211 = vsel %vm158, %v87, 0
    %v214 = vsel %vm158, %v88, 0
    %v217 = vsel %vm158, %v89, 0
    %v220 = vsel %vm158, %v90, 0
    %v223 = vsel %vm158, %v91, 0
    %v226 = vsel %vm158, %v92, 0
    %v229 = vsel %vm158, %v93, 0
    %v232 = vsel %vm158, %v94, 0
    %v235 = vsel %vm158, %v95, 0
    %v238 = vsel %vm158, %v96, 0
    %v241 = vsel %vm158, %v97, 0
    %v244 = vsel %vm158, %v98, 0
    %v247 = vsel %vm158, %v99, 0
    %v250 = vsel %vm158, %v100, 0
    %v253 = vsel %vm158, %v101, 0
    %255 = vmatprep.subr.bf16.mxu0 0
    %256 = vmatpush1.bf16.xpose.msra.mxu0 %v184
    %257 = vmatprep.subr.bf16.mxu0 0
    %258 = vmatpush1.bf16.xpose.msra.mxu0 %v187
    %259 = vmatprep.subr.bf16.mxu0 0
    %260 = vmatpush1.bf16.xpose.msra.mxu0 %v190
    %261 = vmatprep.subr.bf16.mxu0 0
    %262 = vmatpush1.bf16.xpose.msra.mxu0 %v193
    %263 = vmatprep.subr.bf16.mxu0 0
    %264 = vmatpush1.bf16.xpose.msra.mxu0 %v196
    %265 = vmatprep.subr.bf16.mxu0 0
    %266 = vmatpush1.bf16.xpose.msra.mxu0 %v199
    %267 = vmatprep.subr.bf16.mxu0 0
    %268 = vmatpush1.bf16.xpose.msra.mxu0 %v202
    %269 = vmatprep.subr.bf16.mxu0 0
    %270 = vmatpush1.bf16.xpose.msra.mxu0 %v205
    %271 = vmatprep.subr.bf16.mxu0 0
    %272 = vmatpush1.bf16.xpose.msra.mxu0 %v208
    %273 = vmatprep.subr.bf16.mxu0 0
    %274 = vmatpush1.bf16.xpose.msra.mxu0 %v211
    %275 = vmatprep.subr.bf16.mxu0 0
    %276 = vmatpush1.bf16.xpose.msra.mxu0 %v214
    %277 = vmatprep.subr.bf16.mxu0 0
    %278 = vmatpush1.bf16.xpose.msra.mxu0 %v217
    %279 = vmatprep.subr.bf16.mxu0 0
    %280 = vmatpush1.bf16.xpose.msra.mxu0 %v220
    %281 = vmatprep.subr.bf16.mxu0 0
    %282 = vmatpush1.bf16.xpose.msra.mxu0 %v223
    %283 = vmatprep.subr.bf16.mxu0 0
    %284 = vmatpush1.bf16.xpose.msra.mxu0 %v226
    %285 = vmatprep.subr.bf16.mxu0 0
    %286 = vmatpush1.bf16.xpose.msra.mxu0 %v229
    %287 = vmatprep.mubr.bf16.mxu0 0
    %288 = vmatmul.mubr.bf16.gmra.mrb[0].mxu0 %v160
    %v289 = vpop.f32.mrb[0].mxu0
    %v290 = vadd.f32 0.0, %v289
    %v291 = vpop.f32.mrb[0].mxu0
    %v292 = vadd.f32 0.0, %v291
    %v293 = vpop.f32.mrb[0].mxu0
    %v294 = vadd.f32 0.0, %v293
    %v295 = vpop.f32.mrb[0].mxu0
    %v296 = vadd.f32 0.0, %v295
    %297 = vmatprep.mubr.bf16.mxu0 0
    %298 = vmatmul.mubr.bf16.gmra.mrb[0].mxu0 %v163
    %v299 = vpop.f32.mrb[0].mxu0
    %v300 = vadd.f32 0.0, %v299
    %v301 = vpop.f32.mrb[0].mxu0
    %v302 = vadd.f32 0.0, %v301
    %v303 = vpop.f32.mrb[0].mxu0
    %v304 = vadd.f32 0.0, %v303
    %v305 = vpop.f32.mrb[0].mxu0
    %v306 = vadd.f32 0.0, %v305
    %307 = vmatprep.mubr.bf16.mxu0 0
    %308 = vmatmul.mubr.bf16.gmra.mrb[0].mxu0 %v166
    %v309 = vpop.f32.mrb[0].mxu0
    %v310 = vadd.f32 0.0, %v309
    %v311 = vpop.f32.mrb[0].mxu0
    %v312 = vadd.f32 0.0, %v311
    %v313 = vpop.f32.mrb[0].mxu0
    %v314 = vadd.f32 0.0, %v313
    %v315 = vpop.f32.mrb[0].mxu0
    %v316 = vadd.f32 0.0, %v315
    %317 = vmatprep.mubr.bf16.mxu0 0
    %318 = vmatmul.mubr.bf16.gmra.mrb[0].mxu0 %v169
    %v319 = vpop.f32.mrb[0].mxu0
    %v320 = vadd.f32 0.0, %v319
    %v321 = vpop.f32.mrb[0].mxu0
    %v322 = vadd.f32 0.0, %v321
    %v323 = vpop.f32.mrb[0].mxu0
    %v324 = vadd.f32 0.0, %v323
    %v325 = vpop.f32.mrb[0].mxu0
    %v326 = vadd.f32 0.0, %v325
    %327 = vmatprep.mubr.bf16.mxu0 0
    %328 = vmatmul.mubr.bf16.gmra.mrb[0].mxu0 %v172
    %v329 = vpop.f32.mrb[0].mxu0
    %v330 = vadd.f32 0.0, %v329
    %v331 = vpop.f32.mrb[0].mxu0
    %v332 = vadd.f32 0.0, %v331
    %v333 = vpop.f32.mrb[0].mxu0
    %v334 = vadd.f32 0.0, %v333
    %v335 = vpop.f32.mrb[0].mxu0
    %v336 = vadd.f32 0.0, %v335
    %337 = vmatprep.mubr.bf16.mxu0 0
    %338 = vmatmul.mubr.bf16.gmra.mrb[0].mxu0 %v175
    %v339 = vpop.f32.mrb[0].mxu0
    %v340 = vadd.f32 0.0, %v339
    %v341 = vpop.f32.mrb[0].mxu0
    %v342 = vadd.f32 0.0, %v341
    %v343 = vpop.f32.mrb[0].mxu0
    %v344 = vadd.f32 0.0, %v343
    %v345 = vpop.f32.mrb[0].mxu0
    %v346 = vadd.f32 0.0, %v345
    %347 = vmatprep.mubr.bf16.mxu0 0
    %348 = vmatmul.mubr.bf16.gmra.mrb[0].mxu0 %v178
    %v349 = vpop.f32.mrb[0].mxu0
    %v350 = vadd.f32 0.0, %v349
    %v351 = vpop.f32.mrb[0].mxu0
    %v352 = vadd.f32 0.0, %v351
    %v353 = vpop.f32.mrb[0].mxu0
    %v354 = vadd.f32 0.0, %v353
    %v355 = vpop.f32.mrb[0].mxu0
    %v356 = vadd.f32 0.0, %v355
    %357 = vmatprep.mubr.bf16.mxu0 0
    %358 = vmatmul.mubr.bf16.gmra.mrb[0].mxu0 %v181
    %v359 = vpop.f32.mrb[0].mxu0
    %v360 = vadd.f32 0.0, %v359
    %v361 = vpop.f32.mrb[0].mxu0
    %v362 = vadd.f32 0.0, %v361
    %v363 = vpop.f32.mrb[0].mxu0
    %v364 = vadd.f32 0.0, %v363
    %v365 = vpop.f32.mrb[0].mxu0
    %v366 = vadd.f32 0.0, %v365
    %367 = vdwg.mxu0
    %368 = vmatprep.subr.bf16.mxu0 0
    %369 = vmatpush1.bf16.xpose.msra.mxu0 %v232
    %370 = vmatprep.subr.bf16.mxu0 0
    %371 = vmatpush1.bf16.xpose.msra.mxu0 %v235
    %372 = vmatprep.subr.bf16.mxu0 0
    %373 = vmatpush1.bf16.xpose.msra.mxu0 %v238
    %374 = vmatprep.subr.bf16.mxu0 0
    %375 = vmatpush1.bf16.xpose.msra.mxu0 %v241
    %376 = vmatprep.subr.bf16.mxu0 0
    %377 = vmatpush1.bf16.xpose.msra.mxu0 %v244
    %378 = vmatprep.subr.bf16.mxu0 0
    %379 = vmatpush1.bf16.xpose.msra.mxu0 %v247
    %380 = vmatprep.subr.bf16.mxu0 0
    %381 = vmatpush1.bf16.xpose.msra.mxu0 %v250
    %382 = vmatprep.subr.bf16.mxu0 0
    %383 = vmatpush1.bf16.xpose.msra.mxu0 %v253
    %384 = vmatprep.subr.bf16.mxu0 0
    %385 = vmatpush1.bf16.xpose.msra.mxu0 0
    %386 = vmatprep.subr.bf16.mxu0 0
    %387 = vmatpush1.bf16.xpose.msra.mxu0 0
    %388 = vmatprep.subr.bf16.mxu0 0
    %389 = vmatpush1.bf16.xpose.msra.mxu0 0
    %390 = vmatprep.subr.bf16.mxu0 0
    %391 = vmatpush1.bf16.xpose.msra.mxu0 0
    %392 = vmatprep.subr.bf16.mxu0 0
    %393 = vmatpush1.bf16.xpose.msra.mxu0 0
    %394 = vmatprep.subr.bf16.mxu0 0
    %395 = vmatpush1.bf16.xpose.msra.mxu0 0
    %396 = vmatprep.subr.bf16.mxu0 0
    %397 = vmatpush1.bf16.xpose.msra.mxu0 0
    %398 = vmatprep.subr.bf16.mxu0 0
    %399 = vmatpush1.bf16.xpose.msra.mxu0 0
    %400 = vmatprep.mubr.bf16.mxu0 0
    %401 = vmatmul.mubr.bf16.gmra.mrb[0].mxu0 %v160
    %v402 = vpop.f32.mrb[0].mxu0
    %v403 = vadd.f32 0.0, %v402
    %v404 = vpop.f32.mrb[0].mxu0
    %v405 = vpop.f32.mrb[0].mxu0
    %v406 = vadd.f32 0.0, %v405
    %v407 = vpop.f32.mrb[0].mxu0
    %408 = vmatprep.mubr.bf16.mxu0 0
    %409 = vmatmul.mubr.bf16.gmra.mrb[0].mxu0 %v163
    %v410 = vpop.f32.mrb[0].mxu0
    %v411 = vadd.f32 0.0, %v410
    %v412 = vpop.f32.mrb[0].mxu0
    %v413 = vpop.f32.mrb[0].mxu0
    %v414 = vadd.f32 0.0, %v413
    %v415 = vpop.f32.mrb[0].mxu0
    %416 = vmatprep.mubr.bf16.mxu0 0
    %417 = vmatmul.mubr.bf16.gmra.mrb[0].mxu0 %v166
    %v418 = vpop.f32.mrb[0].mxu0
    %v419 = vadd.f32 0.0, %v418
    %v420 = vpop.f32.mrb[0].mxu0
    %v421 = vpop.f32.mrb[0].mxu0
    %v422 = vadd.f32 0.0, %v421
    %v423 = vpop.f32.mrb[0].mxu0
    %424 = vmatprep.mubr.bf16.mxu0 0
    %425 = vmatmul.mubr.bf16.gmra.mrb[0].mxu0 %v169
    %v426 = vpop.f32.mrb[0].mxu0
    %v427 = vadd.f32 0.0, %v426
    %v428 = vpop.f32.mrb[0].mxu0
    %v429 = vpop.f32.mrb[0].mxu0
    %v430 = vadd.f32 0.0, %v429
    %v431 = vpop.f32.mrb[0].mxu0
    %432 = vmatprep.mubr.bf16.mxu0 0
    %433 = vmatmul.mubr.bf16.gmra.mrb[0].mxu0 %v172
    %v434 = vpop.f32.mrb[0].mxu0
    %v435 = vadd.f32 0.0, %v434
    %v436 = vpop.f32.mrb[0].mxu0
    %v437 = vpop.f32.mrb[0].mxu0
    %v438 = vadd.f32 0.0, %v437
    %v439 = vpop.f32.mrb[0].mxu0
    %440 = vmatprep.mubr.bf16.mxu0 0
    %441 = vmatmul.mubr.bf16.gmra.mrb[0].mxu0 %v175
    %v442 = vpop.f32.mrb[0].mxu0
    %v443 = vadd.f32 0.0, %v442
    %v444 = vpop.f32.mrb[0].mxu0
    %v445 = vpop.f32.mrb[0].mxu0
    %v446 = vadd.f32 0.0, %v445
    %v447 = vpop.f32.mrb[0].mxu0
    %448 = vmatprep.mubr.bf16.mxu0 0
    %449 = vmatmul.mubr.bf16.gmra.mrb[0].mxu0 %v178
    %v450 = vpop.f32.mrb[0].mxu0
    %v451 = vadd.f32 0.0, %v450
    %v452 = vpop.f32.mrb[0].mxu0
    %v453 = vpop.f32.mrb[0].mxu0
    %v454 = vadd.f32 0.0, %v453
    %v455 = vpop.f32.mrb[0].mxu0
    %456 = vmatprep.mubr.bf16.mxu0 0
    %457 = vmatmul.mubr.bf16.gmra.mrb[0].mxu0 %v181
    %v458 = vpop.f32.mrb[0].mxu0
    %v459 = vadd.f32 0.0, %v458
    %v460 = vpop.f32.mrb[0].mxu0
    %v461 = vpop.f32.mrb[0].mxu0
    %v462 = vadd.f32 0.0, %v461
    %v463 = vpop.f32.mrb[0].mxu0
    %464 = vdwg.mxu0
    %v465 = vpack.c.bf16 %v294, %v290
    %v466 = vpack.c.bf16 %v296, %v292
    %v467 = vpack.c.bf16 %v406, %v403
    %v468 = vpack.c.bf16 %v304, %v300
    %v469 = vpack.c.bf16 %v306, %v302
    %v470 = vpack.c.bf16 %v414, %v411
    %v471 = vpack.c.bf16 %v314, %v310
    %v472 = vpack.c.bf16 %v316, %v312
    %v473 = vpack.c.bf16 %v422, %v419
    %v474 = vpack.c.bf16 %v324, %v320
    %v475 = vpack.c.bf16 %v326, %v322
    %v476 = vpack.c.bf16 %v430, %v427
    %v477 = vpack.c.bf16 %v334, %v330
    %v478 = vpack.c.bf16 %v336, %v332
    %v479 = vpack.c.bf16 %v438, %v435
    %v480 = vpack.c.bf16 %v344, %v340
    %v481 = vpack.c.bf16 %v346, %v342
    %v482 = vpack.c.bf16 %v446, %v443
    %v483 = vpack.c.bf16 %v354, %v350
    %v484 = vpack.c.bf16 %v356, %v352
    %v485 = vpack.c.bf16 %v454, %v451
    %v486 = vpack.c.bf16 %v364, %v360
    %v487 = vpack.c.bf16 %v366, %v362
    %v488 = vpack.c.bf16 %v462, %v459
    %v489 = vld [vmem:[%s2] sm:$0xf]
    %v490 = vld [vmem:[%s2 + $0x4] sm:$0xf]
    %v491 = vld [vmem:[%s2 + $0x8] sm:$0xf]
    %v492 = vld [vmem:[%s2 + $0xc] sm:$0xf]
    %v493 = vld [vmem:[%s2 + $0x10] sm:$0xf]
    %v494 = vld [vmem:[%s2 + $0x14] sm:$0xf]
    %v495 = vld [vmem:[%s2 + $0x18] sm:$0xf]
    %v496 = vld [vmem:[%s2 + $0x1c] sm:$0xf]
    %v497 = vld [vmem:[%s2 + $0x20] sm:$0xf]
    %v498 = vld [vmem:[%s2 + $0x24] sm:$0xf]
    %v499 = vld [vmem:[%s2 + $0x28] sm:$0xf]
    %v500 = vld [vmem:[%s2 + $0x2c] sm:$0xf]
    %v501 = vld [vmem:[%s2 + $0x30] sm:$0xf]
    %v502 = vld [vmem:[%s2 + $0x34] sm:$0xf]
    %v503 = vld [vmem:[%s2 + $0x38] sm:$0xf]
    %v504 = vld [vmem:[%s2 + $0x3c] sm:$0xf]
    %506 = vset.pattern.permute.xlu0 0
    %507 = vperm.xlu0 %506, %v489
    %v508 = vpop.permute.xlu0 %507
    %v511 = vunpack.c.l.s4 839922192
    %v512 = vunpack.c.0.s8 %v511
    %v513 = vlaneseq
    %v514 = vshrl.u32 %v513, 7
    %v515 = vsub.s32 %v512, %v514
    %v516 = vrot.slane %v508, %v515
    %518 = vset.pattern.permute.xlu0 0
    %519 = vperm.xlu0 %518, %v490
    %v520 = vpop.permute.xlu0 %519
    %v523 = vunpack.c.l.s4 839922192
    %v524 = vunpack.c.0.s8 %v523
    %v525 = vlaneseq
    %v526 = vshrl.u32 %v525, 7
    %v527 = vsub.s32 %v524, %v526
    %v528 = vrot.slane %v520, %v527
    %530 = vset.pattern.permute.xlu0 0
    %531 = vperm.xlu0 %530, %v491
    %v532 = vpop.permute.xlu0 %531
    %v535 = vunpack.c.l.s4 839922192
    %v536 = vunpack.c.0.s8 %v535
    %v537 = vlaneseq
    %v538 = vshrl.u32 %v537, 7
    %v539 = vsub.s32 %v536, %v538
    %v540 = vrot.slane %v532, %v539
    %542 = vset.pattern.permute.xlu0 0
    %543 = vperm.xlu0 %542, %v492
    %v544 = vpop.permute.xlu0 %543
    %v547 = vunpack.c.l.s4 839922192
    %v548 = vunpack.c.0.s8 %v547
    %v549 = vlaneseq
    %v550 = vshrl.u32 %v549, 7
    %v551 = vsub.s32 %v548, %v550
    %v552 = vrot.slane %v544, %v551
    %554 = vset.pattern.permute.xlu0 0
    %555 = vperm.xlu0 %554, %v493
    %v556 = vpop.permute.xlu0 %555
    %v559 = vunpack.c.l.s4 839922192
    %v560 = vunpack.c.0.s8 %v559
    %v561 = vlaneseq
    %v562 = vshrl.u32 %v561, 7
    %v563 = vsub.s32 %v560, %v562
    %v564 = vrot.slane %v556, %v563
    %566 = vset.pattern.permute.xlu0 0
    %567 = vperm.xlu0 %566, %v494
    %v568 = vpop.permute.xlu0 %567
    %v571 = vunpack.c.l.s4 839922192
    %v572 = vunpack.c.0.s8 %v571
    %v573 = vlaneseq
    %v574 = vshrl.u32 %v573, 7
    %v575 = vsub.s32 %v572, %v574
    %v576 = vrot.slane %v568, %v575
    %578 = vset.pattern.permute.xlu0 0
    %579 = vperm.xlu0 %578, %v495
    %v580 = vpop.permute.xlu0 %579
    %v583 = vunpack.c.l.s4 839922192
    %v584 = vunpack.c.0.s8 %v583
    %v585 = vlaneseq
    %v586 = vshrl.u32 %v585, 7
    %v587 = vsub.s32 %v584, %v586
    %v588 = vrot.slane %v580, %v587
    %590 = vset.pattern.permute.xlu0 0
    %591 = vperm.xlu0 %590, %v496
    %v592 = vpop.permute.xlu0 %591
    %v595 = vunpack.c.l.s4 839922192
    %v596 = vunpack.c.0.s8 %v595
    %v597 = vlaneseq
    %v598 = vshrl.u32 %v597, 7
    %v599 = vsub.s32 %v596, %v598
    %v600 = vrot.slane %v592, %v599
    %602 = vset.pattern.permute.xlu0 0
    %603 = vperm.xlu0 %602, %v497
    %v604 = vpop.permute.xlu0 %603
    %v607 = vunpack.c.l.s4 839922192
    %v608 = vunpack.c.0.s8 %v607
    %v609 = vlaneseq
    %v610 = vshrl.u32 %v609, 7
    %v611 = vsub.s32 %v608, %v610
    %v612 = vrot.slane %v604, %v611
    %614 = vset.pattern.permute.xlu0 0
    %615 = vperm.xlu0 %614, %v498
    %v616 = vpop.permute.xlu0 %615
    %v619 = vunpack.c.l.s4 839922192
    %v620 = vunpack.c.0.s8 %v619
    %v621 = vlaneseq
    %v622 = vshrl.u32 %v621, 7
    %v623 = vsub.s32 %v620, %v622
    %v624 = vrot.slane %v616, %v623
    %626 = vset.pattern.permute.xlu0 0
    %627 = vperm.xlu0 %626, %v499
    %v628 = vpop.permute.xlu0 %627
    %v631 = vunpack.c.l.s4 839922192
    %v632 = vunpack.c.0.s8 %v631
    %v633 = vlaneseq
    %v634 = vshrl.u32 %v633, 7
    %v635 = vsub.s32 %v632, %v634
    %v636 = vrot.slane %v628, %v635
    %638 = vset.pattern.permute.xlu0 0
    %639 = vperm.xlu0 %638, %v500
    %v640 = vpop.permute.xlu0 %639
    %v643 = vunpack.c.l.s4 839922192
    %v644 = vunpack.c.0.s8 %v643
    %v645 = vlaneseq
    %v646 = vshrl.u32 %v645, 7
    %v647 = vsub.s32 %v644, %v646
    %v648 = vrot.slane %v640, %v647
    %650 = vset.pattern.permute.xlu0 0
    %651 = vperm.xlu0 %650, %v501
    %v652 = vpop.permute.xlu0 %651
    %v655 = vunpack.c.l.s4 839922192
    %v656 = vunpack.c.0.s8 %v655
    %v657 = vlaneseq
    %v658 = vshrl.u32 %v657, 7
    %v659 = vsub.s32 %v656, %v658
    %v660 = vrot.slane %v652, %v659
    %662 = vset.pattern.permute.xlu0 0
    %663 = vperm.xlu0 %662, %v502
    %v664 = vpop.permute.xlu0 %663
    %v667 = vunpack.c.l.s4 839922192
    %v668 = vunpack.c.0.s8 %v667
    %v669 = vlaneseq
    %v670 = vshrl.u32 %v669, 7
    %v671 = vsub.s32 %v668, %v670
    %v672 = vrot.slane %v664, %v671
    %674 = vset.pattern.permute.xlu0 0
    %675 = vperm.xlu0 %674, %v503
    %v676 = vpop.permute.xlu0 %675
    %v679 = vunpack.c.l.s4 839922192
    %v680 = vunpack.c.0.s8 %v679
    %v681 = vlaneseq
    %v682 = vshrl.u32 %v681, 7
    %v683 = vsub.s32 %v680, %v682
    %v684 = vrot.slane %v676, %v683
    %686 = vset.pattern.permute.xlu0 0
    %687 = vperm.xlu0 %686, %v504
    %v688 = vpop.permute.xlu0 %687
    %v691 = vunpack.c.l.s4 839922192
    %v692 = vunpack.c.0.s8 %v691
    %v693 = vlaneseq
    %v694 = vshrl.u32 %v693, 7
    %v695 = vsub.s32 %v692, %v694
    %v696 = vrot.slane %v688, %v695
    %v713 = vunpack.c.l.b16 %v516
    %v714 = vunpack.c.l.b16 %v528
    %v715 = vunpack.c.l.b16 %v540
    %v716 = vunpack.c.l.b16 %v552
    %v717 = vunpack.c.l.b16 %v564
    %v718 = vunpack.c.l.b16 %v576
    %v719 = vunpack.c.l.b16 %v588
    %v720 = vunpack.c.l.b16 %v600
    %v721 = vunpack.c.l.b16 %v612
    %v722 = vunpack.c.l.b16 %v624
    %v723 = vunpack.c.l.b16 %v636
    %v724 = vunpack.c.l.b16 %v648
    %v725 = vunpack.c.l.b16 %v660
    %v726 = vunpack.c.l.b16 %v672
    %v727 = vunpack.c.l.b16 %v684
    %v728 = vunpack.c.l.b16 %v696
    %v729 = vpack.c.b16 %v714, %v713
    %v730 = vpack.c.b16 %v716, %v715
    %v731 = vpack.c.b16 %v718, %v717
    %v732 = vpack.c.b16 %v720, %v719
    %v733 = vpack.c.b16 %v722, %v721
    %v734 = vpack.c.b16 %v724, %v723
    %v735 = vpack.c.b16 %v726, %v725
    %v736 = vpack.c.b16 %v728, %v727
    %v745 = vadd.bf16 %v465, %v729
    %v746 = vadd.bf16 %v466, %v729
    %v747 = vadd.bf16 %v467, %v729
    %v748 = vadd.bf16 %v468, %v730
    %v749 = vadd.bf16 %v469, %v730
    %v750 = vadd.bf16 %v470, %v730
    %v751 = vadd.bf16 %v471, %v731
    %v752 = vadd.bf16 %v472, %v731
    %v753 = vadd.bf16 %v473, %v731
    %v754 = vadd.bf16 %v474, %v732
    %v755 = vadd.bf16 %v475, %v732
    %v756 = vadd.bf16 %v476, %v732
    %v757 = vadd.bf16 %v477, %v733
    %v758 = vadd.bf16 %v478, %v733
    %v759 = vadd.bf16 %v479, %v733
    %v760 = vadd.bf16 %v480, %v734
    %v761 = vadd.bf16 %v481, %v734
    %v762 = vadd.bf16 %v482, %v734
    %v763 = vadd.bf16 %v483, %v735
    %v764 = vadd.bf16 %v484, %v735
    %v765 = vadd.bf16 %v485, %v735
    %v766 = vadd.bf16 %v486, %v736
    %v767 = vadd.bf16 %v487, %v736
    %v768 = vadd.bf16 %v488, %v736
    %v769 = vmax.bf16 %v745, 0
    %v770 = vmax.bf16 %v746, 0
    %v771 = vmax.bf16 %v747, 0
    %v772 = vmax.bf16 %v748, 0
    %v773 = vmax.bf16 %v749, 0
    %v774 = vmax.bf16 %v750, 0
    %v775 = vmax.bf16 %v751, 0
    %v776 = vmax.bf16 %v752, 0
    %v777 = vmax.bf16 %v753, 0
    %v778 = vmax.bf16 %v754, 0
    %v779 = vmax.bf16 %v755, 0
    %v780 = vmax.bf16 %v756, 0
    %v781 = vmax.bf16 %v757, 0
    %v782 = vmax.bf16 %v758, 0
    %v783 = vmax.bf16 %v759, 0
    %v784 = vmax.bf16 %v760, 0
    %v785 = vmax.bf16 %v761, 0
    %v786 = vmax.bf16 %v762, 0
    %v787 = vmax.bf16 %v763, 0
    %v788 = vmax.bf16 %v764, 0
    %v789 = vmax.bf16 %v765, 0
    %v790 = vmax.bf16 %v766, 0
    %v791 = vmax.bf16 %v767, 0
    %v792 = vmax.bf16 %v768, 0
    %v793 = vld [vmem:[%s3] sm:$0xf]
    %v794 = vld [vmem:[%s3 + $0x4] sm:$0xf]
    %v795 = vld [vmem:[%s3 + $0x8] sm:$0xf]
    %v796 = vld [vmem:[%s3 + $0xc] sm:$0xf]
    %v797 = vld [vmem:[%s3 + $0x10] sm:$0xf]
    %v798 = vld [vmem:[%s3 + $0x14] sm:$0xf]
    %v799 = vld [vmem:[%s3 + $0x18] sm:$0xf]
    %v800 = vld [vmem:[%s3 + $0x1c] sm:$0xf]
    %v801 = vld [vmem:[%s3 + $0x20] sm:$0xf]
    %v802 = vld [vmem:[%s3 + $0x24] sm:$0xf]
    %v803 = vld [vmem:[%s3 + $0x28] sm:$0xf]
    %v804 = vld [vmem:[%s3 + $0x2c] sm:$0xf]
    %v805 = vld [vmem:[%s3 + $0x30] sm:$0xf]
    %v806 = vld [vmem:[%s3 + $0x34] sm:$0xf]
    %v807 = vld [vmem:[%s3 + $0x38] sm:$0xf]
    %v808 = vld [vmem:[%s3 + $0x3c] sm:$0xf]
    %v825 = vunpack.c.l.b16 %v793
    %v826 = vunpack.c.l.b16 %v794
    %v827 = vunpack.c.l.b16 %v795
    %v828 = vunpack.c.l.b16 %v796
    %v829 = vunpack.c.l.b16 %v797
    %v830 = vunpack.c.l.b16 %v798
    %v831 = vunpack.c.l.b16 %v799
    %v832 = vunpack.c.l.b16 %v800
    %v833 = vunpack.c.l.b16 %v801
    %v834 = vunpack.c.l.b16 %v802
    %v835 = vunpack.c.l.b16 %v803
    %v836 = vunpack.c.l.b16 %v804
    %v837 = vunpack.c.l.b16 %v805
    %v838 = vunpack.c.l.b16 %v806
    %v839 = vunpack.c.l.b16 %v807
    %v840 = vunpack.c.l.b16 %v808
    %v841 = vpack.c.b16 %v826, %v825
    %v842 = vpack.c.b16 %v828, %v827
    %v843 = vpack.c.b16 %v830, %v829
    %v844 = vpack.c.b16 %v832, %v831
    %v845 = vpack.c.b16 %v834, %v833
    %v846 = vpack.c.b16 %v836, %v835
    %v847 = vpack.c.b16 %v838, %v837
    %v848 = vpack.c.b16 %v840, %v839
    %857 = vmatprep.subr.bf16.mxu0 %v770
    %858 = vmatpush1.bf16.msra.mxu0 %v769
    %859 = vmatprep.subr.bf16.mxu0 %v773
    %860 = vmatpush1.bf16.msra.mxu0 %v772
    %861 = vmatprep.subr.bf16.mxu0 %v776
    %862 = vmatpush1.bf16.msra.mxu0 %v775
    %863 = vmatprep.subr.bf16.mxu0 %v779
    %864 = vmatpush1.bf16.msra.mxu0 %v778
    %865 = vmatprep.subr.bf16.mxu0 %v782
    %866 = vmatpush1.bf16.msra.mxu0 %v781
    %867 = vmatprep.subr.bf16.mxu0 %v785
    %868 = vmatpush1.bf16.msra.mxu0 %v784
    %869 = vmatprep.subr.bf16.mxu0 %v788
    %870 = vmatpush1.bf16.msra.mxu0 %v787
    %871 = vmatprep.subr.bf16.mxu0 %v791
    %872 = vmatpush1.bf16.msra.mxu0 %v790
    %873 = vmatprep.subr.bf16.mxu0 0
    %874 = vmatpush1.bf16.msra.mxu0 0
    %875 = vmatprep.subr.bf16.mxu0 0
    %876 = vmatpush1.bf16.msra.mxu0 0
    %877 = vmatprep.subr.bf16.mxu0 0
    %878 = vmatpush1.bf16.msra.mxu0 0
    %879 = vmatprep.subr.bf16.mxu0 0
    %880 = vmatpush1.bf16.msra.mxu0 0
    %881 = vmatprep.subr.bf16.mxu0 0
    %882 = vmatpush1.bf16.msra.mxu0 0
    %883 = vmatprep.subr.bf16.mxu0 0
    %884 = vmatpush1.bf16.msra.mxu0 0
    %885 = vmatprep.subr.bf16.mxu0 0
    %886 = vmatpush1.bf16.msra.mxu0 0
    %887 = vmatprep.subr.bf16.mxu0 0
    %888 = vmatpush1.bf16.msra.mxu0 0
    %889 = vmatprep.mubr.bf16.mxu0 0
    %890 = vmatmul.mubr.bf16.gmra.mrb[0].mxu0 %v841
    %v891 = vpop.f32.mrb[0].mxu0
    %v892 = vadd.f32 0.0, %v891
    %v893 = vpop.f32.mrb[0].mxu0
    %v894 = vadd.f32 0.0, %v893
    %v895 = vpop.f32.mrb[0].mxu0
    %v896 = vadd.f32 0.0, %v895
    %v897 = vpop.f32.mrb[0].mxu0
    %v898 = vadd.f32 0.0, %v897
    %899 = vmatprep.mubr.bf16.mxu0 0
    %900 = vmatmul.mubr.bf16.gmra.mrb[0].mxu0 %v842
    %v901 = vpop.f32.mrb[0].mxu0
    %v902 = vadd.f32 0.0, %v901
    %v903 = vpop.f32.mrb[0].mxu0
    %v904 = vadd.f32 0.0, %v903
    %v905 = vpop.f32.mrb[0].mxu0
    %v906 = vadd.f32 0.0, %v905
    %v907 = vpop.f32.mrb[0].mxu0
    %v908 = vadd.f32 0.0, %v907
    %909 = vmatprep.mubr.bf16.mxu0 0
    %910 = vmatmul.mubr.bf16.gmra.mrb[0].mxu0 %v843
    %v911 = vpop.f32.mrb[0].mxu0
    %v912 = vadd.f32 0.0, %v911
    %v913 = vpop.f32.mrb[0].mxu0
    %v914 = vadd.f32 0.0, %v913
    %v915 = vpop.f32.mrb[0].mxu0
    %v916 = vadd.f32 0.0, %v915
    %v917 = vpop.f32.mrb[0].mxu0
    %v918 = vadd.f32 0.0, %v917
    %919 = vmatprep.mubr.bf16.mxu0 0
    %920 = vmatmul.mubr.bf16.gmra.mrb[0].mxu0 %v844
    %v921 = vpop.f32.mrb[0].mxu0
    %v922 = vadd.f32 0.0, %v921
    %v923 = vpop.f32.mrb[0].mxu0
    %v924 = vadd.f32 0.0, %v923
    %v925 = vpop.f32.mrb[0].mxu0
    %v926 = vadd.f32 0.0, %v925
    %v927 = vpop.f32.mrb[0].mxu0
    %v928 = vadd.f32 0.0, %v927
    %929 = vmatprep.mubr.bf16.mxu0 0
    %930 = vmatmul.mubr.bf16.gmra.mrb[0].mxu0 %v845
    %v931 = vpop.f32.mrb[0].mxu0
    %v932 = vadd.f32 0.0, %v931
    %v933 = vpop.f32.mrb[0].mxu0
    %v934 = vadd.f32 0.0, %v933
    %v935 = vpop.f32.mrb[0].mxu0
    %v936 = vadd.f32 0.0, %v935
    %v937 = vpop.f32.mrb[0].mxu0
    %v938 = vadd.f32 0.0, %v937
    %939 = vmatprep.mubr.bf16.mxu0 0
    %940 = vmatmul.mubr.bf16.gmra.mrb[0].mxu0 %v846
    %v941 = vpop.f32.mrb[0].mxu0
    %v942 = vadd.f32 0.0, %v941
    %v943 = vpop.f32.mrb[0].mxu0
    %v944 = vadd.f32 0.0, %v943
    %v945 = vpop.f32.mrb[0].mxu0
    %v946 = vadd.f32 0.0, %v945
    %v947 = vpop.f32.mrb[0].mxu0
    %v948 = vadd.f32 0.0, %v947
    %949 = vmatprep.mubr.bf16.mxu0 0
    %950 = vmatmul.mubr.bf16.gmra.mrb[0].mxu0 %v847
    %v951 = vpop.f32.mrb[0].mxu0
    %v952 = vadd.f32 0.0, %v951
    %v953 = vpop.f32.mrb[0].mxu0
    %v954 = vadd.f32 0.0, %v953
    %v955 = vpop.f32.mrb[0].mxu0
    %v956 = vadd.f32 0.0, %v955
    %v957 = vpop.f32.mrb[0].mxu0
    %v958 = vadd.f32 0.0, %v957
    %959 = vmatprep.mubr.bf16.mxu0 0
    %960 = vmatmul.mubr.bf16.gmra.mrb[0].mxu0 %v848
    %v961 = vpop.f32.mrb[0].mxu0
    %v962 = vadd.f32 0.0, %v961
    %v963 = vpop.f32.mrb[0].mxu0
    %v964 = vadd.f32 0.0, %v963
    %v965 = vpop.f32.mrb[0].mxu0
    %v966 = vadd.f32 0.0, %v965
    %v967 = vpop.f32.mrb[0].mxu0
    %v968 = vadd.f32 0.0, %v967
    %969 = vdwg.mxu0
    %970 = vmatprep.subr.bf16.mxu0 0
    %971 = vmatpush1.bf16.msra.mxu0 %v771
    %972 = vmatprep.subr.bf16.mxu0 0
    %973 = vmatpush1.bf16.msra.mxu0 %v774
    %974 = vmatprep.subr.bf16.mxu0 0
    %975 = vmatpush1.bf16.msra.mxu0 %v777
    %976 = vmatprep.subr.bf16.mxu0 0
    %977 = vmatpush1.bf16.msra.mxu0 %v780
    %978 = vmatprep.subr.bf16.mxu0 0
    %979 = vmatpush1.bf16.msra.mxu0 %v783
    %980 = vmatprep.subr.bf16.mxu0 0
    %981 = vmatpush1.bf16.msra.mxu0 %v786
    %982 = vmatprep.subr.bf16.mxu0 0
    %983 = vmatpush1.bf16.msra.mxu0 %v789
    %984 = vmatprep.subr.bf16.mxu0 0
    %985 = vmatpush1.bf16.msra.mxu0 %v792
    %986 = vmatprep.subr.bf16.mxu0 0
    %987 = vmatpush1.bf16.msra.mxu0 0
    %988 = vmatprep.subr.bf16.mxu0 0
    %989 = vmatpush1.bf16.msra.mxu0 0
    %990 = vmatprep.subr.bf16.mxu0 0
    %991 = vmatpush1.bf16.msra.mxu0 0
    %992 = vmatprep.subr.bf16.mxu0 0
    %993 = vmatpush1.bf16.msra.mxu0 0
    %994 = vmatprep.subr.bf16.mxu0 0
    %995 = vmatpush1.bf16.msra.mxu0 0
    %996 = vmatprep.subr.bf16.mxu0 0
    %997 = vmatpush1.bf16.msra.mxu0 0
    %998 = vmatprep.subr.bf16.mxu0 0
    %999 = vmatpush1.bf16.msra.mxu0 0
    %1000 = vmatprep.subr.bf16.mxu0 0
    %1001 = vmatpush1.bf16.msra.mxu0 0
    %1002 = vmatprep.mubr.bf16.mxu0 0
    %1003 = vmatmul.mubr.bf16.gmra.mrb[0].mxu0 %v841
    %v1004 = vpop.f32.mrb[0].mxu0
    %v1005 = vadd.f32 0.0, %v1004
    %v1006 = vpop.f32.mrb[0].mxu0
    %v1007 = vpop.f32.mrb[0].mxu0
    %v1008 = vadd.f32 0.0, %v1007
    %v1009 = vpop.f32.mrb[0].mxu0
    %1010 = vmatprep.mubr.bf16.mxu0 0
    %1011 = vmatmul.mubr.bf16.gmra.mrb[0].mxu0 %v842
    %v1012 = vpop.f32.mrb[0].mxu0
    %v1013 = vadd.f32 0.0, %v1012
    %v1014 = vpop.f32.mrb[0].mxu0
    %v1015 = vpop.f32.mrb[0].mxu0
    %v1016 = vadd.f32 0.0, %v1015
    %v1017 = vpop.f32.mrb[0].mxu0
    %1018 = vmatprep.mubr.bf16.mxu0 0
    %1019 = vmatmul.mubr.bf16.gmra.mrb[0].mxu0 %v843
    %v1020 = vpop.f32.mrb[0].mxu0
    %v1021 = vadd.f32 0.0, %v1020
    %v1022 = vpop.f32.mrb[0].mxu0
    %v1023 = vpop.f32.mrb[0].mxu0
    %v1024 = vadd.f32 0.0, %v1023
    %v1025 = vpop.f32.mrb[0].mxu0
    %1026 = vmatprep.mubr.bf16.mxu0 0
    %1027 = vmatmul.mubr.bf16.gmra.mrb[0].mxu0 %v844
    %v1028 = vpop.f32.mrb[0].mxu0
    %v1029 = vadd.f32 0.0, %v1028
    %v1030 = vpop.f32.mrb[0].mxu0
    %v1031 = vpop.f32.mrb[0].mxu0
    %v1032 = vadd.f32 0.0, %v1031
    %v1033 = vpop.f32.mrb[0].mxu0
    %1034 = vmatprep.mubr.bf16.mxu0 0
    %1035 = vmatmul.mubr.bf16.gmra.mrb[0].mxu0 %v845
    %v1036 = vpop.f32.mrb[0].mxu0
    %v1037 = vadd.f32 0.0, %v1036
    %v1038 = vpop.f32.mrb[0].mxu0
    %v1039 = vpop.f32.mrb[0].mxu0
    %v1040 = vadd.f32 0.0, %v1039
    %v1041 = vpop.f32.mrb[0].mxu0
    %1042 = vmatprep.mubr.bf16.mxu0 0
    %1043 = vmatmul.mubr.bf16.gmra.mrb[0].mxu0 %v846
    %v1044 = vpop.f32.mrb[0].mxu0
    %v1045 = vadd.f32 0.0, %v1044
    %v1046 = vpop.f32.mrb[0].mxu0
    %v1047 = vpop.f32.mrb[0].mxu0
    %v1048 = vadd.f32 0.0, %v1047
    %v1049 = vpop.f32.mrb[0].mxu0
    %1050 = vmatprep.mubr.bf16.mxu0 0
    %1051 = vmatmul.mubr.bf16.gmra.mrb[0].mxu0 %v847
    %v1052 = vpop.f32.mrb[0].mxu0
    %v1053 = vadd.f32 0.0, %v1052
    %v1054 = vpop.f32.mrb[0].mxu0
    %v1055 = vpop.f32.mrb[0].mxu0
    %v1056 = vadd.f32 0.0, %v1055
    %v1057 = vpop.f32.mrb[0].mxu0
    %1058 = vmatprep.mubr.bf16.mxu0 0
    %1059 = vmatmul.mubr.bf16.gmra.mrb[0].mxu0 %v848
    %v1060 = vpop.f32.mrb[0].mxu0
    %v1061 = vadd.f32 0.0, %v1060
    %v1062 = vpop.f32.mrb[0].mxu0
    %v1063 = vpop.f32.mrb[0].mxu0
    %v1064 = vadd.f32 0.0, %v1063
    %v1065 = vpop.f32.mrb[0].mxu0
    %1066 = vdwg.mxu0
    %v1067 = vpack.c.bf16 %v896, %v892
    %v1068 = vpack.c.bf16 %v898, %v894
    %v1069 = vpack.c.bf16 %v1008, %v1005
    %v1070 = vpack.c.bf16 %v906, %v902
    %v1071 = vpack.c.bf16 %v908, %v904
    %v1072 = vpack.c.bf16 %v1016, %v1013
    %v1073 = vpack.c.bf16 %v916, %v912
    %v1074 = vpack.c.bf16 %v918, %v914
    %v1075 = vpack.c.bf16 %v1024, %v1021
    %v1076 = vpack.c.bf16 %v926, %v922
    %v1077 = vpack.c.bf16 %v928, %v924
    %v1078 = vpack.c.bf16 %v1032, %v1029
    %v1079 = vpack.c.bf16 %v936, %v932
    %v1080 = vpack.c.bf16 %v938, %v934
    %v1081 = vpack.c.bf16 %v1040, %v1037
    %v1082 = vpack.c.bf16 %v946, %v942
    %v1083 = vpack.c.bf16 %v948, %v944
    %v1084 = vpack.c.bf16 %v1048, %v1045
    %v1085 = vpack.c.bf16 %v956, %v952
    %v1086 = vpack.c.bf16 %v958, %v954
    %v1087 = vpack.c.bf16 %v1056, %v1053
    %v1088 = vpack.c.bf16 %v966, %v962
    %v1089 = vpack.c.bf16 %v968, %v964
    %v1090 = vpack.c.bf16 %v1064, %v1061
    %v1091 = vld [vmem:[%s4] sm:$0xf]
    %v1092 = vld [vmem:[%s4 + $0x4] sm:$0xf]
    %v1093 = vld [vmem:[%s4 + $0x8] sm:$0xf]
    %v1094 = vld [vmem:[%s4 + $0xc] sm:$0xf]
    %v1095 = vld [vmem:[%s4 + $0x10] sm:$0xf]
    %v1096 = vld [vmem:[%s4 + $0x14] sm:$0xf]
    %v1097 = vld [vmem:[%s4 + $0x18] sm:$0xf]
    %v1098 = vld [vmem:[%s4 + $0x1c] sm:$0xf]
    %v1099 = vld [vmem:[%s4 + $0x20] sm:$0xf]
    %v1100 = vld [vmem:[%s4 + $0x24] sm:$0xf]
    %v1101 = vld [vmem:[%s4 + $0x28] sm:$0xf]
    %v1102 = vld [vmem:[%s4 + $0x2c] sm:$0xf]
    %v1103 = vld [vmem:[%s4 + $0x30] sm:$0xf]
    %v1104 = vld [vmem:[%s4 + $0x34] sm:$0xf]
    %v1105 = vld [vmem:[%s4 + $0x38] sm:$0xf]
    %v1106 = vld [vmem:[%s4 + $0x3c] sm:$0xf]
    %1108 = vset.pattern.permute.xlu0 0
    %1109 = vperm.xlu0 %1108, %v1091
    %v1110 = vpop.permute.xlu0 %1109
    %v1113 = vunpack.c.l.s4 839922192
    %v1114 = vunpack.c.0.s8 %v1113
    %v1115 = vlaneseq
    %v1116 = vshrl.u32 %v1115, 7
    %v1117 = vsub.s32 %v1114, %v1116
    %v1118 = vrot.slane %v1110, %v1117
    %1120 = vset.pattern.permute.xlu0 0
    %1121 = vperm.xlu0 %1120, %v1092
    %v1122 = vpop.permute.xlu0 %1121
    %v1125 = vunpack.c.l.s4 839922192
    %v1126 = vunpack.c.0.s8 %v1125
    %v1127 = vlaneseq
    %v1128 = vshrl.u32 %v1127, 7
    %v1129 = vsub.s32 %v1126, %v1128
    %v1130 = vrot.slane %v1122, %v1129
    %1132 = vset.pattern.permute.xlu0 0
    %1133 = vperm.xlu0 %1132, %v1093
    %v1134 = vpop.permute.xlu0 %1133
    %v1137 = vunpack.c.l.s4 839922192
    %v1138 = vunpack.c.0.s8 %v1137
    %v1139 = vlaneseq
    %v1140 = vshrl.u32 %v1139, 7
    %v1141 = vsub.s32 %v1138, %v1140
    %v1142 = vrot.slane %v1134, %v1141
    %1144 = vset.pattern.permute.xlu0 0
    %1145 = vperm.xlu0 %1144, %v1094
    %v1146 = vpop.permute.xlu0 %1145
    %v1149 = vunpack.c.l.s4 839922192
    %v1150 = vunpack.c.0.s8 %v1149
    %v1151 = vlaneseq
    %v1152 = vshrl.u32 %v1151, 7
    %v1153 = vsub.s32 %v1150, %v1152
    %v1154 = vrot.slane %v1146, %v1153
    %1156 = vset.pattern.permute.xlu0 0
    %1157 = vperm.xlu0 %1156, %v1095
    %v1158 = vpop.permute.xlu0 %1157
    %v1161 = vunpack.c.l.s4 839922192
    %v1162 = vunpack.c.0.s8 %v1161
    %v1163 = vlaneseq
    %v1164 = vshrl.u32 %v1163, 7
    %v1165 = vsub.s32 %v1162, %v1164
    %v1166 = vrot.slane %v1158, %v1165
    %1168 = vset.pattern.permute.xlu0 0
    %1169 = vperm.xlu0 %1168, %v1096
    %v1170 = vpop.permute.xlu0 %1169
    %v1173 = vunpack.c.l.s4 839922192
    %v1174 = vunpack.c.0.s8 %v1173
    %v1175 = vlaneseq
    %v1176 = vshrl.u32 %v1175, 7
    %v1177 = vsub.s32 %v1174, %v1176
    %v1178 = vrot.slane %v1170, %v1177
    %1180 = vset.pattern.permute.xlu0 0
    %1181 = vperm.xlu0 %1180, %v1097
    %v1182 = vpop.permute.xlu0 %1181
    %v1185 = vunpack.c.l.s4 839922192
    %v1186 = vunpack.c.0.s8 %v1185
    %v1187 = vlaneseq
    %v1188 = vshrl.u32 %v1187, 7
    %v1189 = vsub.s32 %v1186, %v1188
    %v1190 = vrot.slane %v1182, %v1189
    %1192 = vset.pattern.permute.xlu0 0
    %1193 = vperm.xlu0 %1192, %v1098
    %v1194 = vpop.permute.xlu0 %1193
    %v1197 = vunpack.c.l.s4 839922192
    %v1198 = vunpack.c.0.s8 %v1197
    %v1199 = vlaneseq
    %v1200 = vshrl.u32 %v1199, 7
    %v1201 = vsub.s32 %v1198, %v1200
    %v1202 = vrot.slane %v1194, %v1201
    %1204 = vset.pattern.permute.xlu0 0
    %1205 = vperm.xlu0 %1204, %v1099
    %v1206 = vpop.permute.xlu0 %1205
    %v1209 = vunpack.c.l.s4 839922192
    %v1210 = vunpack.c.0.s8 %v1209
    %v1211 = vlaneseq
    %v1212 = vshrl.u32 %v1211, 7
    %v1213 = vsub.s32 %v1210, %v1212
    %v1214 = vrot.slane %v1206, %v1213
    %1216 = vset.pattern.permute.xlu0 0
    %1217 = vperm.xlu0 %1216, %v1100
    %v1218 = vpop.permute.xlu0 %1217
    %v1221 = vunpack.c.l.s4 839922192
    %v1222 = vunpack.c.0.s8 %v1221
    %v1223 = vlaneseq
    %v1224 = vshrl.u32 %v1223, 7
    %v1225 = vsub.s32 %v1222, %v1224
    %v1226 = vrot.slane %v1218, %v1225
    %1228 = vset.pattern.permute.xlu0 0
    %1229 = vperm.xlu0 %1228, %v1101
    %v1230 = vpop.permute.xlu0 %1229
    %v1233 = vunpack.c.l.s4 839922192
    %v1234 = vunpack.c.0.s8 %v1233
    %v1235 = vlaneseq
    %v1236 = vshrl.u32 %v1235, 7
    %v1237 = vsub.s32 %v1234, %v1236
    %v1238 = vrot.slane %v1230, %v1237
    %1240 = vset.pattern.permute.xlu0 0
    %1241 = vperm.xlu0 %1240, %v1102
    %v1242 = vpop.permute.xlu0 %1241
    %v1245 = vunpack.c.l.s4 839922192
    %v1246 = vunpack.c.0.s8 %v1245
    %v1247 = vlaneseq
    %v1248 = vshrl.u32 %v1247, 7
    %v1249 = vsub.s32 %v1246, %v1248
    %v1250 = vrot.slane %v1242, %v1249
    %1252 = vset.pattern.permute.xlu0 0
    %1253 = vperm.xlu0 %1252, %v1103
    %v1254 = vpop.permute.xlu0 %1253
    %v1257 = vunpack.c.l.s4 839922192
    %v1258 = vunpack.c.0.s8 %v1257
    %v1259 = vlaneseq
    %v1260 = vshrl.u32 %v1259, 7
    %v1261 = vsub.s32 %v1258, %v1260
    %v1262 = vrot.slane %v1254, %v1261
    %1264 = vset.pattern.permute.xlu0 0
    %1265 = vperm.xlu0 %1264, %v1104
    %v1266 = vpop.permute.xlu0 %1265
    %v1269 = vunpack.c.l.s4 839922192
    %v1270 = vunpack.c.0.s8 %v1269
    %v1271 = vlaneseq
    %v1272 = vshrl.u32 %v1271, 7
    %v1273 = vsub.s32 %v1270, %v1272
    %v1274 = vrot.slane %v1266, %v1273
    %1276 = vset.pattern.permute.xlu0 0
    %1277 = vperm.xlu0 %1276, %v1105
    %v1278 = vpop.permute.xlu0 %1277
    %v1281 = vunpack.c.l.s4 839922192
    %v1282 = vunpack.c.0.s8 %v1281
    %v1283 = vlaneseq
    %v1284 = vshrl.u32 %v1283, 7
    %v1285 = vsub.s32 %v1282, %v1284
    %v1286 = vrot.slane %v1278, %v1285
    %1288 = vset.pattern.permute.xlu0 0
    %1289 = vperm.xlu0 %1288, %v1106
    %v1290 = vpop.permute.xlu0 %1289
    %v1293 = vunpack.c.l.s4 839922192
    %v1294 = vunpack.c.0.s8 %v1293
    %v1295 = vlaneseq
    %v1296 = vshrl.u32 %v1295, 7
    %v1297 = vsub.s32 %v1294, %v1296
    %v1298 = vrot.slane %v1290, %v1297
    %v1315 = vunpack.c.l.b16 %v1118
    %v1316 = vunpack.c.l.b16 %v1130
    %v1317 = vunpack.c.l.b16 %v1142
    %v1318 = vunpack.c.l.b16 %v1154
    %v1319 = vunpack.c.l.b16 %v1166
    %v1320 = vunpack.c.l.b16 %v1178
    %v1321 = vunpack.c.l.b16 %v1190
    %v1322 = vunpack.c.l.b16 %v1202
    %v1323 = vunpack.c.l.b16 %v1214
    %v1324 = vunpack.c.l.b16 %v1226
    %v1325 = vunpack.c.l.b16 %v1238
    %v1326 = vunpack.c.l.b16 %v1250
    %v1327 = vunpack.c.l.b16 %v1262
    %v1328 = vunpack.c.l.b16 %v1274
    %v1329 = vunpack.c.l.b16 %v1286
    %v1330 = vunpack.c.l.b16 %v1298
    %v1331 = vpack.c.b16 %v1316, %v1315
    %v1332 = vpack.c.b16 %v1318, %v1317
    %v1333 = vpack.c.b16 %v1320, %v1319
    %v1334 = vpack.c.b16 %v1322, %v1321
    %v1335 = vpack.c.b16 %v1324, %v1323
    %v1336 = vpack.c.b16 %v1326, %v1325
    %v1337 = vpack.c.b16 %v1328, %v1327
    %v1338 = vpack.c.b16 %v1330, %v1329
    %v1347 = vadd.bf16 %v1067, %v1331
    %v1348 = vadd.bf16 %v1068, %v1331
    %v1349 = vadd.bf16 %v1069, %v1331
    %v1350 = vadd.bf16 %v1070, %v1332
    %v1351 = vadd.bf16 %v1071, %v1332
    %v1352 = vadd.bf16 %v1072, %v1332
    %v1353 = vadd.bf16 %v1073, %v1333
    %v1354 = vadd.bf16 %v1074, %v1333
    %v1355 = vadd.bf16 %v1075, %v1333
    %v1356 = vadd.bf16 %v1076, %v1334
    %v1357 = vadd.bf16 %v1077, %v1334
    %v1358 = vadd.bf16 %v1078, %v1334
    %v1359 = vadd.bf16 %v1079, %v1335
    %v1360 = vadd.bf16 %v1080, %v1335
    %v1361 = vadd.bf16 %v1081, %v1335
    %v1362 = vadd.bf16 %v1082, %v1336
    %v1363 = vadd.bf16 %v1083, %v1336
    %v1364 = vadd.bf16 %v1084, %v1336
    %v1365 = vadd.bf16 %v1085, %v1337
    %v1366 = vadd.bf16 %v1086, %v1337
    %v1367 = vadd.bf16 %v1087, %v1337
    %v1368 = vadd.bf16 %v1088, %v1338
    %v1369 = vadd.bf16 %v1089, %v1338
    %v1370 = vadd.bf16 %v1090, %v1338
    %v1371 = vmax.bf16 %v1347, 0
    %v1372 = vmax.bf16 %v1348, 0
    %v1373 = vmax.bf16 %v1349, 0
    %v1374 = vmax.bf16 %v1350, 0
    %v1375 = vmax.bf16 %v1351, 0
    %v1376 = vmax.bf16 %v1352, 0
    %v1377 = vmax.bf16 %v1353, 0
    %v1378 = vmax.bf16 %v1354, 0
    %v1379 = vmax.bf16 %v1355, 0
    %v1380 = vmax.bf16 %v1356, 0
    %v1381 = vmax.bf16 %v1357, 0
    %v1382 = vmax.bf16 %v1358, 0
    %v1383 = vmax.bf16 %v1359, 0
    %v1384 = vmax.bf16 %v1360, 0
    %v1385 = vmax.bf16 %v1361, 0
    %v1386 = vmax.bf16 %v1362, 0
    %v1387 = vmax.bf16 %v1363, 0
    %v1388 = vmax.bf16 %v1364, 0
    %v1389 = vmax.bf16 %v1365, 0
    %v1390 = vmax.bf16 %v1366, 0
    %v1391 = vmax.bf16 %v1367, 0
    %v1392 = vmax.bf16 %v1368, 0
    %v1393 = vmax.bf16 %v1369, 0
    %v1394 = vmax.bf16 %v1370, 0
    %v1395 = vunpack.c.l.bf16 %v1371
    %v1396 = vunpack.c.l.bf16 %v1372
    %v1397 = vunpack.c.l.bf16 %v1373
    %v1398 = vunpack.c.h.bf16 %v1371
    %v1399 = vunpack.c.h.bf16 %v1372
    %v1400 = vunpack.c.h.bf16 %v1373
    %v1401 = vunpack.c.l.bf16 %v1374
    %v1402 = vunpack.c.l.bf16 %v1375
    %v1403 = vunpack.c.l.bf16 %v1376
    %v1404 = vunpack.c.h.bf16 %v1374
    %v1405 = vunpack.c.h.bf16 %v1375
    %v1406 = vunpack.c.h.bf16 %v1376
    %v1407 = vunpack.c.l.bf16 %v1377
    %v1408 = vunpack.c.l.bf16 %v1378
    %v1409 = vunpack.c.l.bf16 %v1379
    %v1410 = vunpack.c.h.bf16 %v1377
    %v1411 = vunpack.c.h.bf16 %v1378
    %v1412 = vunpack.c.h.bf16 %v1379
    %v1413 = vunpack.c.l.bf16 %v1380
    %v1414 = vunpack.c.l.bf16 %v1381
    %v1415 = vunpack.c.l.bf16 %v1382
    %v1416 = vunpack.c.h.bf16 %v1380
    %v1417 = vunpack.c.h.bf16 %v1381
    %v1418 = vunpack.c.h.bf16 %v1382
    %v1419 = vunpack.c.l.bf16 %v1383
    %v1420 = vunpack.c.l.bf16 %v1384
    %v1421 = vunpack.c.l.bf16 %v1385
    %v1422 = vunpack.c.h.bf16 %v1383
    %v1423 = vunpack.c.h.bf16 %v1384
    %v1424 = vunpack.c.h.bf16 %v1385
    %v1425 = vunpack.c.l.bf16 %v1386
    %v1426 = vunpack.c.l.bf16 %v1387
    %v1427 = vunpack.c.l.bf16 %v1388
    %v1428 = vunpack.c.h.bf16 %v1386
    %v1429 = vunpack.c.h.bf16 %v1387
    %v1430 = vunpack.c.h.bf16 %v1388
    %v1431 = vunpack.c.l.bf16 %v1389
    %v1432 = vunpack.c.l.bf16 %v1390
    %v1433 = vunpack.c.l.bf16 %v1391
    %v1434 = vunpack.c.h.bf16 %v1389
    %v1435 = vunpack.c.h.bf16 %v1390
    %v1436 = vunpack.c.h.bf16 %v1391
    %v1437 = vunpack.c.l.bf16 %v1392
    %v1438 = vunpack.c.l.bf16 %v1393
    %v1439 = vunpack.c.l.bf16 %v1394
    %v1440 = vunpack.c.h.bf16 %v1392
    %v1441 = vunpack.c.h.bf16 %v1393
    %v1442 = vunpack.c.h.bf16 %v1394
    %v1443 = vld [vmem:[%s5] sm:$0xff]
    %v1444 = vld [vmem:[%s5 + $0x8] sm:$0xff]
    %v1445 = vld [vmem:[%s5 + $0x10] sm:$0xff]
    %v1446 = vld [vmem:[%s5 + $0x18] sm:$0xff]
    %v1447 = vld [vmem:[%s5 + $0x20] sm:$0xff]
    %v1448 = vld [vmem:[%s5 + $0x28] sm:$0xff]
    %v1449 = vld [vmem:[%s5 + $0x30] sm:$0xff]
    %v1450 = vld [vmem:[%s5 + $0x38] sm:$0xff]
    %v1451 = vld [vmem:[%s5 + $0x40] sm:$0xff]
    %v1452 = vld [vmem:[%s5 + $0x48] sm:$0xff]
    %v1453 = vld [vmem:[%s5 + $0x50] sm:$0xff]
    %v1454 = vld [vmem:[%s5 + $0x58] sm:$0xff]
    %v1455 = vld [vmem:[%s5 + $0x60] sm:$0xff]
    %v1456 = vld [vmem:[%s5 + $0x68] sm:$0xff]
    %v1457 = vld [vmem:[%s5 + $0x70] sm:$0xff]
    %v1458 = vld [vmem:[%s5 + $0x78] sm:$0xff]
    %1460 = vset.pattern.permute.xlu0 0
    %1461 = vperm.xlu0 %1460, %v1443
    %v1462 = vpop.permute.xlu0 %1461
    %1465 = vset.pattern.permute.xlu0 0
    %1466 = vperm.xlu0 %1465, %v1444
    %v1467 = vpop.permute.xlu0 %1466
    %1470 = vset.pattern.permute.xlu0 0
    %1471 = vperm.xlu0 %1470, %v1445
    %v1472 = vpop.permute.xlu0 %1471
    %1475 = vset.pattern.permute.xlu0 0
    %1476 = vperm.xlu0 %1475, %v1446
    %v1477 = vpop.permute.xlu0 %1476
    %1480 = vset.pattern.permute.xlu0 0
    %1481 = vperm.xlu0 %1480, %v1447
    %v1482 = vpop.permute.xlu0 %1481
    %1485 = vset.pattern.permute.xlu0 0
    %1486 = vperm.xlu0 %1485, %v1448
    %v1487 = vpop.permute.xlu0 %1486
    %1490 = vset.pattern.permute.xlu0 0
    %1491 = vperm.xlu0 %1490, %v1449
    %v1492 = vpop.permute.xlu0 %1491
    %1495 = vset.pattern.permute.xlu0 0
    %1496 = vperm.xlu0 %1495, %v1450
    %v1497 = vpop.permute.xlu0 %1496
    %1500 = vset.pattern.permute.xlu0 0
    %1501 = vperm.xlu0 %1500, %v1451
    %v1502 = vpop.permute.xlu0 %1501
    %1505 = vset.pattern.permute.xlu0 0
    %1506 = vperm.xlu0 %1505, %v1452
    %v1507 = vpop.permute.xlu0 %1506
    %1510 = vset.pattern.permute.xlu0 0
    %1511 = vperm.xlu0 %1510, %v1453
    %v1512 = vpop.permute.xlu0 %1511
    %1515 = vset.pattern.permute.xlu0 0
    %1516 = vperm.xlu0 %1515, %v1454
    %v1517 = vpop.permute.xlu0 %1516
    %1520 = vset.pattern.permute.xlu0 0
    %1521 = vperm.xlu0 %1520, %v1455
    %v1522 = vpop.permute.xlu0 %1521
    %1525 = vset.pattern.permute.xlu0 0
    %1526 = vperm.xlu0 %1525, %v1456
    %v1527 = vpop.permute.xlu0 %1526
    %1530 = vset.pattern.permute.xlu0 0
    %1531 = vperm.xlu0 %1530, %v1457
    %v1532 = vpop.permute.xlu0 %1531
    %1535 = vset.pattern.permute.xlu0 0
    %1536 = vperm.xlu0 %1535, %v1458
    %v1537 = vpop.permute.xlu0 %1536
    %v1539 = vmul.f32 %v1395, %v1462
    %v1540 = vmul.f32 %v1396, %v1462
    %v1541 = vmul.f32 %v1397, %v1462
    %v1542 = vmul.f32 %v1398, %v1467
    %v1543 = vmul.f32 %v1399, %v1467
    %v1544 = vmul.f32 %v1400, %v1467
    %v1545 = vmul.f32 %v1401, %v1472
    %v1546 = vmul.f32 %v1402, %v1472
    %v1547 = vmul.f32 %v1403, %v1472
    %v1548 = vmul.f32 %v1404, %v1477
    %v1549 = vmul.f32 %v1405, %v1477
    %v1550 = vmul.f32 %v1406, %v1477
    %v1551 = vmul.f32 %v1407, %v1482
    %v1552 = vmul.f32 %v1408, %v1482
    %v1553 = vmul.f32 %v1409, %v1482
    %v1554 = vmul.f32 %v1410, %v1487
    %v1555 = vmul.f32 %v1411, %v1487
    %v1556 = vmul.f32 %v1412, %v1487
    %v1557 = vmul.f32 %v1413, %v1492
    %v1558 = vmul.f32 %v1414, %v1492
    %v1559 = vmul.f32 %v1415, %v1492
    %v1560 = vmul.f32 %v1416, %v1497
    %v1561 = vmul.f32 %v1417, %v1497
    %v1562 = vmul.f32 %v1418, %v1497
    %v1563 = vmul.f32 %v1419, %v1502
    %v1564 = vmul.f32 %v1420, %v1502
    %v1565 = vmul.f32 %v1421, %v1502
    %v1566 = vmul.f32 %v1422, %v1507
    %v1567 = vmul.f32 %v1423, %v1507
    %v1568 = vmul.f32 %v1424, %v1507
    %v1569 = vmul.f32 %v1425, %v1512
    %v1570 = vmul.f32 %v1426, %v1512
    %v1571 = vmul.f32 %v1427, %v1512
    %v1572 = vmul.f32 %v1428, %v1517
    %v1573 = vmul.f32 %v1429, %v1517
    %v1574 = vmul.f32 %v1430, %v1517
    %v1575 = vmul.f32 %v1431, %v1522
    %v1576 = vmul.f32 %v1432, %v1522
    %v1577 = vmul.f32 %v1433, %v1522
    %v1578 = vmul.f32 %v1434, %v1527
    %v1579 = vmul.f32 %v1435, %v1527
    %v1580 = vmul.f32 %v1436, %v1527
    %v1581 = vmul.f32 %v1437, %v1532
    %v1582 = vmul.f32 %v1438, %v1532
    %v1583 = vmul.f32 %v1439, %v1532
    %v1584 = vmul.f32 %v1440, %v1537
    %v1585 = vmul.f32 %v1441, %v1537
    %v1586 = vmul.f32 %v1442, %v1537
    %v1587 = vadd.f32 %v1539, %v1542
    %v1588 = vadd.f32 %v1587, %v1545
    %v1589 = vadd.f32 %v1588, %v1548
    %v1590 = vadd.f32 %v1589, %v1551
    %v1591 = vadd.f32 %v1590, %v1554
    %v1592 = vadd.f32 %v1591, %v1557
    %v1593 = vadd.f32 %v1592, %v1560
    %v1594 = vadd.f32 %v1593, %v1563
    %v1595 = vadd.f32 %v1594, %v1566
    %v1596 = vadd.f32 %v1595, %v1569
    %v1597 = vadd.f32 %v1596, %v1572
    %v1598 = vadd.f32 %v1597, %v1575
    %v1599 = vadd.f32 %v1598, %v1578
    %v1600 = vadd.f32 %v1599, %v1581
    %v1601 = vadd.f32 %v1600, %v1584
    %v1602 = vrot.slane %v1601, 4
    %v1603 = vadd.f32 %v1601, %v1602
    %v1604 = vrot.slane %v1603, 2
    %v1605 = vadd.f32 %v1603, %v1604
    %v1606 = vrot.slane %v1605, 1
    %v1607 = vadd.f32 %v1605, %v1606
    %v1608 = vadd.f32 %v1540, %v1543
    %v1609 = vadd.f32 %v1608, %v1546
    %v1610 = vadd.f32 %v1609, %v1549
    %v1611 = vadd.f32 %v1610, %v1552
    %v1612 = vadd.f32 %v1611, %v1555
    %v1613 = vadd.f32 %v1612, %v1558
    %v1614 = vadd.f32 %v1613, %v1561
    %v1615 = vadd.f32 %v1614, %v1564
    %v1616 = vadd.f32 %v1615, %v1567
    %v1617 = vadd.f32 %v1616, %v1570
    %v1618 = vadd.f32 %v1617, %v1573
    %v1619 = vadd.f32 %v1618, %v1576
    %v1620 = vadd.f32 %v1619, %v1579
    %v1621 = vadd.f32 %v1620, %v1582
    %v1622 = vadd.f32 %v1621, %v1585
    %v1623 = vrot.slane %v1622, 4
    %v1624 = vadd.f32 %v1622, %v1623
    %v1625 = vrot.slane %v1624, 2
    %v1626 = vadd.f32 %v1624, %v1625
    %v1627 = vrot.slane %v1626, 1
    %v1628 = vadd.f32 %v1626, %v1627
    %v1629 = vadd.f32 %v1541, %v1544
    %v1630 = vadd.f32 %v1629, %v1547
    %v1631 = vadd.f32 %v1630, %v1550
    %v1632 = vadd.f32 %v1631, %v1553
    %v1633 = vadd.f32 %v1632, %v1556
    %v1634 = vadd.f32 %v1633, %v1559
    %v1635 = vadd.f32 %v1634, %v1562
    %v1636 = vadd.f32 %v1635, %v1565
    %v1637 = vadd.f32 %v1636, %v1568
    %v1638 = vadd.f32 %v1637, %v1571
    %v1639 = vadd.f32 %v1638, %v1574
    %v1640 = vadd.f32 %v1639, %v1577
    %v1641 = vadd.f32 %v1640, %v1580
    %v1642 = vadd.f32 %v1641, %v1583
    %v1643 = vadd.f32 %v1642, %v1586
    %v1644 = vrot.slane %v1643, 4
    %v1645 = vadd.f32 %v1643, %v1644
    %v1646 = vrot.slane %v1645, 2
    %v1647 = vadd.f32 %v1645, %v1646
    %v1648 = vrot.slane %v1647, 1
    %v1649 = vadd.f32 %v1647, %v1648
    %v1650 = vld [vmem:[#allocation2] sm:$0x1]
    %1652 = vset.pattern.permute.xlu0 0
    %1653 = vperm.xlu0 %1652, %v1650
    %v1654 = vpop.permute.xlu0 %1653
    %v1656 = vlaneseq
    %v1657 = vshrl.u32 %v1656, 7
    %v1658 = vsub.s32 0, %v1657
    %v1659 = vrot.slane %v1654, %v1658
    %v1660 = vadd.f32 %v1607, %v1659
    %v1661 = vadd.f32 %v1628, %v1659
    %v1662 = vadd.f32 %v1649, %v1659
    %v1663 = vand.u32 2147483647, %v1660
    %v1664 = vand.u32 2147483647, %v1661
    %v1665 = vand.u32 2147483647, %v1662
    %v1666 = vsub.f32 0.0, %v1663
    %v1667 = vsub.f32 0.0, %v1664
    %v1668 = vsub.f32 0.0, %v1665
    %v1669 = vmul.f32 %v1666, 1.442695
    %v1670 = vpow.pop %v1669
    %v1671 = vmul.f32 %v1667, 1.442695
    %v1672 = vpow.pop %v1671
    %v1673 = vmul.f32 %v1668, 1.442695
    %v1674 = vpow.pop %v1673
    %v1675 = vadd.f32 %v1670, 1.0
    %v1676 = vadd.f32 %v1672, 1.0
    %v1677 = vadd.f32 %v1674, 1.0
    %v1678 = vrcp.pop %v1675
    %v1679 = vrcp.pop %v1676
    %v1680 = vrcp.pop %v1677
    %vm1681 = vcmp.ge.f32.partialorder %v1660, 0.0
    %vm1682 = vcmp.ge.f32.partialorder %v1661, 0.0
    %vm1683 = vcmp.ge.f32.partialorder %v1662, 0.0
    %v1684 = vmul.f32 %v1670, %v1678
    %v1685 = vmul.f32 %v1672, %v1679
    %v1686 = vmul.f32 %v1674, %v1680
    %v1687 = vsel %vm1681, %v1678, %v1684
    %v1688 = vsel %vm1682, %v1679, %v1685
    %v1689 = vsel %vm1683, %v1680, %v1686
    %v1693 = vcombine.low %v1687, %v1688
    %v1695 = vunpack.c.l.s4 1966171168
    %v1696 = vunpack.c.0.s8 %v1695
    %v1697 = vlaneseq
    %v1698 = vshrl.u32 %v1697, 7
    %v1699 = vsub.s32 %v1696, %v1698
    %v1700 = vrot.slane %v1693, %v1699
    %v1702 = vunpack.c.l.s4 1966171168
    %v1703 = vunpack.c.0.s8 %v1702
    %v1704 = vlaneseq
    %v1705 = vshrl.u32 %v1704, 7
    %v1706 = vsub.s32 %v1703, %v1705
    %v1707 = vrot.slane %v1689, %v1706
    %v1708 = vcombine.low %v1700, %v1707
    %v1710 = vunpack.c.l.s4 1966171168
    %v1711 = vunpack.c.0.s8 %v1710
    %v1712 = vlaneseq
    %v1713 = vshrl.u32 %v1712, 7
    %v1714 = vsub.s32 %v1711, %v1713
    %v1715 = vrot.slane %v1708, %v1714
    %v1717 = vlaneseq
    %vm1718 = vcmp.ge.s32.totalorder %v1717, 0
    %vm1719 = vcmp.lt.s32.totalorder %v1717, 384
    %vm1720 = vmand %vm1718, %vm1719
    %1721 = vst.msk [vmem:[#allocation3] sm:$0x7] %vm1720, %v1715
    // Predicated region
    $region30: #{tpu_custom_call.1} parent=1 // pred_check
      _
    $region31: #{tpu_custom_call.1} parent=1 // pred_check_branch
      %1723 = sbr.rel (0) target = $region33
    $region32: #{tpu_custom_call.1} parent=1 // pred_region
      %s1725 = ssub.s32 48, 48
      %1726 = vsyncadd [#allocation4], %s1725
      %s1728 = sshll.u32 [#allocation3], 4
      %s1729 = int_to_ptr.vmem [resolvable:$true] %s1728
      %1731 = dma.vmem_to_hbm [thread:$0]  %s1729, 48, %s7, [#allocation4]
    $region33: #{tpu_custom_call.1} parent=1 // pred_fallthru
      _
    // Predicated region
    $region34: #{tpu_custom_call.1} parent=1 // pred_check
      _
    $region35: #{tpu_custom_call.1} parent=1 // pred_check_branch
      %1733 = sbr.rel (0) target = $region37
    $region36: #{tpu_custom_call.1} parent=1 // pred_region
      %1734 = dma.done [#allocation4], 48
    $region37: #{tpu_custom_call.1} parent=1 // pred_fallthru
      _
    %1735 = vsyncpa [#allocation4], 1

</llo_original>
